<compile_context>
chip_gen: v5e
topology: v5e:2x2
jax: 0.10.0
libtpu: 0.0.40
codegen_flags: <defaults>
</compile_context>

<pallas_src>
import math
import functools

import jax
import jax.numpy as jnp
from jax.experimental import pallas as pl
from jax.experimental.pallas import tpu as pltpu

# Module hyper-parameters (from the PyTorch source)
BATCH_SIZE = 4
CONTEXT_LENGTH = 16               # T
EMB_DIM = 64                      # size_token_embeddings (D)
NUM_HEADS = 4                     # H
HEAD_SIZE = EMB_DIM // NUM_HEADS  # 16
LANE = 128                        # TPU lane width

# One kernel step handles the whole batch (grid-step overhead dominates at this
# size).  On v7x set this to 2 so each of the two TensorCores gets half the
# batch (must divide BATCH_SIZE); on v5e/v6e keep it at 1.
NUM_BATCH_BLOCKS = 1


def _mha_kernel(x_ref, wqkv_ref, wo_ref, bo_ref, o_ref, *, batch, seq):
    """Whole (batch-block) MHA forward in one grid step.

    x_ref    : (batch*seq, D)   flattened activations
    wqkv_ref : (D, 3*D)         fused [Wq * 1/sqrt(hs) | Wk | Wv]
    wo_ref   : (D, 128)         output projection, lane-padded to 128
    bo_ref   : (1, 128)         output bias, lane-padded
    o_ref    : (batch*seq, 128) lane-dense output (cols >= D are zero padding)
    """
    D = x_ref.shape[1]
    H = NUM_HEADS
    hs = D // H
    T = seq

    x = x_ref[...].astype(jnp.float32)                     # (B*T, D)

    # One fused QKV matmul: (B*T, D) @ (D, 3D) fills the MXU output lanes 3x
    # better than three separate N=64 matmuls.
    qkv = jnp.dot(x, wqkv_ref[...], preferred_element_type=jnp.float32)  # (B*T, 3D)

    def gather_heads(off):
        # Column block -> (H*batch, T, hs): lane-slice each head and stack the
        # heads into the leading batch axis so attention is ONE 3-D contraction.
        return jnp.concatenate(
            [qkv[:, off + h * hs: off + (h + 1) * hs].reshape(batch, T, hs)
             for h in range(H)],
            axis=0)                                         # g = h*batch + b

    q = gather_heads(0)          # already pre-scaled by 1/sqrt(hs) via Wq
    k = gather_heads(D)
    v = gather_heads(2 * D)
    G = H * batch

    # Scores + causal mask.  Large finite negative instead of -inf so the code
    # stays NaN-safe if ever reused with masks that blank an entire row.
    s = jnp.einsum('gqd,gkd->gqk', q, k, preferred_element_type=jnp.float32)
    rows = jax.lax.broadcasted_iota(jnp.int32, (G, T, T), 1)
    cols = jax.lax.broadcasted_iota(jnp.int32, (G, T, T), 2)
    s = jnp.where(rows >= cols, s, -1e30)

    # Numerically-stable softmax; the reciprocal goes to the (idle) EUP slot.
    s = s - jnp.max(s, axis=-1, keepdims=True)
    p = jnp.exp(s)
    p = p * pl.reciprocal(jnp.sum(p, axis=-1, keepdims=True), approx=True)

    o = jnp.einsum('gqk,gkd->gqd', p, v, preferred_element_type=jnp.float32)  # (G, T, hs)

    # Undo the head stacking: (H*batch, T, hs) -> (batch*T, H*hs) == (B*T, D)
    concat = jnp.concatenate(
        [o[h * batch:(h + 1) * batch].reshape(batch * T, hs) for h in range(H)],
        axis=-1)

    # Output projection; 128 output lanes -> dense, unmasked stores.
    out = jnp.dot(concat, wo_ref[...], preferred_element_type=jnp.float32)
    out = out + bo_ref[...]
    o_ref[...] = out.astype(o_ref.dtype)


@jax.jit
def multi_head_attention(x, wqkv, wo_pad, bo_pad):
    """x: (B, T, D) -> (B, T, D).  Weights must come from prepare_params()."""
    B, T, D = x.shape
    rows = B * T
    rows_blk = rows // NUM_BATCH_BLOCKS
    n_out = wo_pad.shape[1]

    x2d = x.reshape(rows, D)

    out = pl.pallas_call(
        functools.partial(_mha_kernel, batch=B // NUM_BATCH_BLOCKS, seq=T),
        out_shape=jax.ShapeDtypeStruct((rows, n_out), x.dtype),
        grid_spec=pltpu.PrefetchScalarGridSpec(
            num_scalar_prefetch=0,
            grid=(NUM_BATCH_BLOCKS,),
            in_specs=[
                pl.BlockSpec((rows_blk, D), lambda i: (i, 0)),
                pl.BlockSpec(wqkv.shape, lambda i: (0, 0)),
                pl.BlockSpec(wo_pad.shape, lambda i: (0, 0)),
                pl.BlockSpec(bo_pad.shape, lambda i: (0, 0)),
            ],
            out_specs=pl.BlockSpec((rows_blk, n_out), lambda i: (i, 0)),
        ),
        compiler_params=pltpu.CompilerParams(
            dimension_semantics=("parallel",)),
    )(x2d, wqkv, wo_pad, bo_pad)

    return out[:, :D].reshape(B, T, D)


def prepare_params(wq, wk, wv, wo, bo):
    """One-time weight prep: fold 1/sqrt(hs) into Wq, fuse QKV, lane-pad out-proj."""
    scale = 1.0 / math.sqrt(HEAD_SIZE)
    wqkv = jnp.concatenate([wq * scale, wk, wv], axis=-1)        # (D, 3D)
    pad = (-wo.shape[1]) % LANE                                  # 64 -> pad to 128
    wo_pad = jnp.pad(wo, ((0, 0), (0, pad)))
    bo_pad = jnp.pad(bo.reshape(1, -1), ((0, 0), (0, pad)))
    return wqkv, wo_pad, bo_pad


def _reference(x, wq, wk, wv, wo, bo):
    """Pure-JAX reference matching the PyTorch forward (dropout = identity)."""
    B, T, D = x.shape
    q = x @ wq
    k = x @ wk
    v = x @ wv
    q = q.reshape(B, T, NUM_HEADS, HEAD_SIZE).transpose(0, 2, 1, 3)
    k = k.reshape(B, T, NUM_HEADS, HEAD_SIZE).transpose(0, 2, 1, 3)
    v = v.reshape(B, T, NUM_HEADS, HEAD_SIZE).transpose(0, 2, 1, 3)
    s = jnp.einsum("bhqd,bhkd->bhqk", q, k) / math.sqrt(HEAD_SIZE)
    mask = jnp.tril(jnp.ones((T, T), dtype=bool))
    s = jnp.where(mask, s, -jnp.inf)
    p = jax.nn.softmax(s, axis=-1)
    o = jnp.einsum("bhqk,bhkd->bhqd", p, v)
    o = o.transpose(0, 2, 1, 3).reshape(B, T, D)
    return o @ wo + bo


if __name__ == "__main__":
    key = jax.random.PRNGKey(0)
    k_x, k_q, k_k, k_v, k_o, k_b = jax.random.split(key, 6)

    B, T, D = BATCH_SIZE, CONTEXT_LENGTH, EMB_DIM

    x = jax.random.normal(k_x, (B, T, D), dtype=jnp.float32)

    # Per-head PyTorch Linear weights have shape (head_size, D); y = x @ W^T.
    # Build (H, head_size, D), transpose each head and concat -> (D, H*head_size).
    def make_qkv(k):
        w = jax.random.normal(k, (NUM_HEADS, HEAD_SIZE, D), dtype=jnp.float32)
        w = w * (1.0 / math.sqrt(D))
        return jnp.concatenate([w[h].T for h in range(NUM_HEADS)], axis=-1)

    wq = make_qkv(k_q)
    wk = make_qkv(k_k)
    wv = make_qkv(k_v)

    # Output projection ("protection") Linear(D, D) with bias; y = x @ Wo^T + b
    wo_t = jax.random.normal(k_o, (D, D), dtype=jnp.float32) * (1.0 / math.sqrt(D))
    wo = wo_t.T                                      # used as x @ wo
    bo = jax.random.normal(k_b, (D,), dtype=jnp.float32) * 0.01

    wqkv, wo_pad, bo_pad = prepare_params(wq, wk, wv, wo, bo)

    out = multi_head_attention(x, wqkv, wo_pad, bo_pad)
    out = jax.block_until_ready(out)

    ref = _reference(x, wq, wk, wv, wo, bo)
    assert out.shape == (B, T, D)
    # Tolerance loosened (vs. 1e-4) only because the softmax denominator uses the
    # approximate EUP reciprocal; real layout/semantics bugs would be O(1) off.
    assert jnp.allclose(out, ref, atol=2e-2, rtol=2e-2), "mismatch vs reference"

    print("KERNEL_OK")
</pallas_src>

<mosaic_0001>
module attributes {stable_mosaic.version = 11 : i64} {
  func.func @_mha_kernel(%arg0: i32, %arg1: memref<64x64xf32, #tpu.memory_space<vmem>>, %arg2: memref<64x192xf32, #tpu.memory_space<vmem>>, %arg3: memref<64x128xf32, #tpu.memory_space<vmem>>, %arg4: memref<1x128xf32, #tpu.memory_space<vmem>>, %arg5: memref<64x128xf32, #tpu.memory_space<vmem>>) attributes {dimension_semantics = [#tpu.dimension_semantics<parallel>], iteration_bounds = array<i64: 1>, scalar_prefetch = 0 : i64, scratch_operands = 0 : i64, tpu.core_type = #tpu.core_type<tc>, window_params = [{transform_indices = @transform_0, window_bounds = array<i64: 64, 64>}, {pipeline_mode = #tpu.pipeline_mode<synchronous>, transform_indices = @transform_1, window_bounds = array<i64: 64, 192>}, {pipeline_mode = #tpu.pipeline_mode<synchronous>, transform_indices = @transform_2, window_bounds = array<i64: 64, 128>}, {pipeline_mode = #tpu.pipeline_mode<synchronous>, transform_indices = @transform_3, window_bounds = array<i64: 1, 128>}, {transform_indices = @transform_4, window_bounds = array<i64: 64, 128>}]} {
    %c0 = arith.constant 0 : index
    %c0_0 = arith.constant 0 : index
    %0 = vector.load %arg1[%c0, %c0_0] : memref<64x64xf32, #tpu.memory_space<vmem>>, vector<64x64xf32>
    %c0_1 = arith.constant 0 : index
    %c0_2 = arith.constant 0 : index
    %1 = vector.load %arg2[%c0_1, %c0_2] : memref<64x192xf32, #tpu.memory_space<vmem>>, vector<64x192xf32>
    %cst = arith.constant dense<0.000000e+00> : vector<64x192xf32>
    %2 = tpu.matmul %0, %1, %cst {dimension_numbers = #tpu.dot_dimension_numbers<[1], [0], [0], [1], [0, 0, 1, 1], [], []>} : vector<64x64xf32>, vector<64x192xf32>, vector<64x192xf32> -> vector<64x192xf32>
    %3 = vector.extract_strided_slice %2 {offsets = [0, 0], sizes = [64, 16], strides = [1, 1]} : vector<64x192xf32> to vector<64x16xf32>
    %4 = vector.shape_cast %3 : vector<64x16xf32> to vector<4x16x16xf32>
    %5 = vector.extract_strided_slice %2 {offsets = [0, 16], sizes = [64, 16], strides = [1, 1]} : vector<64x192xf32> to vector<64x16xf32>
    %6 = vector.shape_cast %5 : vector<64x16xf32> to vector<4x16x16xf32>
    %7 = vector.extract_strided_slice %2 {offsets = [0, 32], sizes = [64, 16], strides = [1, 1]} : vector<64x192xf32> to vector<64x16xf32>
    %8 = vector.shape_cast %7 : vector<64x16xf32> to vector<4x16x16xf32>
    %9 = vector.extract_strided_slice %2 {offsets = [0, 48], sizes = [64, 16], strides = [1, 1]} : vector<64x192xf32> to vector<64x16xf32>
    %10 = vector.shape_cast %9 : vector<64x16xf32> to vector<4x16x16xf32>
    %11 = tpu.concatenate %4, %6, %8, %10 in 0 : vector<4x16x16xf32>, vector<4x16x16xf32>, vector<4x16x16xf32>, vector<4x16x16xf32> -> vector<16x16x16xf32>
    %12 = vector.extract_strided_slice %2 {offsets = [0, 64], sizes = [64, 16], strides = [1, 1]} : vector<64x192xf32> to vector<64x16xf32>
    %13 = vector.shape_cast %12 : vector<64x16xf32> to vector<4x16x16xf32>
    %14 = vector.extract_strided_slice %2 {offsets = [0, 80], sizes = [64, 16], strides = [1, 1]} : vector<64x192xf32> to vector<64x16xf32>
    %15 = vector.shape_cast %14 : vector<64x16xf32> to vector<4x16x16xf32>
    %16 = vector.extract_strided_slice %2 {offsets = [0, 96], sizes = [64, 16], strides = [1, 1]} : vector<64x192xf32> to vector<64x16xf32>
    %17 = vector.shape_cast %16 : vector<64x16xf32> to vector<4x16x16xf32>
    %18 = vector.extract_strided_slice %2 {offsets = [0, 112], sizes = [64, 16], strides = [1, 1]} : vector<64x192xf32> to vector<64x16xf32>
    %19 = vector.shape_cast %18 : vector<64x16xf32> to vector<4x16x16xf32>
    %20 = tpu.concatenate %13, %15, %17, %19 in 0 : vector<4x16x16xf32>, vector<4x16x16xf32>, vector<4x16x16xf32>, vector<4x16x16xf32> -> vector<16x16x16xf32>
    %21 = vector.extract_strided_slice %2 {offsets = [0, 128], sizes = [64, 16], strides = [1, 1]} : vector<64x192xf32> to vector<64x16xf32>
    %22 = vector.shape_cast %21 : vector<64x16xf32> to vector<4x16x16xf32>
    %23 = vector.extract_strided_slice %2 {offsets = [0, 144], sizes = [64, 16], strides = [1, 1]} : vector<64x192xf32> to vector<64x16xf32>
    %24 = vector.shape_cast %23 : vector<64x16xf32> to vector<4x16x16xf32>
    %25 = vector.extract_strided_slice %2 {offsets = [0, 160], sizes = [64, 16], strides = [1, 1]} : vector<64x192xf32> to vector<64x16xf32>
    %26 = vector.shape_cast %25 : vector<64x16xf32> to vector<4x16x16xf32>
    %27 = vector.extract_strided_slice %2 {offsets = [0, 176], sizes = [64, 16], strides = [1, 1]} : vector<64x192xf32> to vector<64x16xf32>
    %28 = vector.shape_cast %27 : vector<64x16xf32> to vector<4x16x16xf32>
    %29 = tpu.concatenate %22, %24, %26, %28 in 0 : vector<4x16x16xf32>, vector<4x16x16xf32>, vector<4x16x16xf32>, vector<4x16x16xf32> -> vector<16x16x16xf32>
    "tpu.trace_start"() <{level = 10 : i32, message = "gqd,gkd->gqk"}> : () -> ()
    %cst_3 = arith.constant dense<0.000000e+00> : vector<16x16x16xf32>
    %30 = tpu.matmul %11, %20, %cst_3 {dimension_numbers = #tpu.dot_dimension_numbers<[2], [2], [1], [1], [0, 0, 0, 1, 1, 1], [0], [0]>} : vector<16x16x16xf32>, vector<16x16x16xf32>, vector<16x16x16xf32> -> vector<16x16x16xf32>
    "tpu.trace_stop"() : () -> ()
    %31 = tpu.iota {dimensions = array<i32: 1>} : vector<16x16x16xi32>
    %32 = tpu.iota {dimensions = array<i32: 2>} : vector<16x16x16xi32>
    %33 = arith.cmpi sge, %31, %32 : vector<16x16x16xi32>
    %cst_4 = arith.constant -1.000000e+30 : f32
    %34 = vector.broadcast %cst_4 : f32 to vector<16x16x16xf32>
    %35 = arith.select %33, %30, %34 : vector<16x16x16xi1>, vector<16x16x16xf32>
    %cst_5 = arith.constant dense<0xFF800000> : vector<16x16xf32>
    %36 = vector.multi_reduction <maximumf>, %35, %cst_5 [2] : vector<16x16x16xf32> to vector<16x16xf32>
    %37 = vector.shape_cast %36 : vector<16x16xf32> to vector<16x16x1xf32>
    %38 = vector.broadcast %37 : vector<16x16x1xf32> to vector<16x16x16xf32>
    %39 = arith.subf %35, %38 : vector<16x16x16xf32>
    %40 = math.exp %39 : vector<16x16x16xf32>
    %cst_6 = arith.constant dense<0.000000e+00> : vector<16x16xf32>
    %41 = vector.multi_reduction <add>, %40, %cst_6 [2] : vector<16x16x16xf32> to vector<16x16xf32>
    %42 = vector.shape_cast %41 : vector<16x16xf32> to vector<16x16x1xf32>
    %43 = tpu.reciprocal %42 {approx = true} : vector<16x16x1xf32> -> vector<16x16x1xf32>
    %44 = vector.broadcast %43 : vector<16x16x1xf32> to vector<16x16x16xf32>
    %45 = arith.mulf %40, %44 : vector<16x16x16xf32>
    "tpu.trace_start"() <{level = 10 : i32, message = "gqk,gkd->gqd"}> : () -> ()
    %cst_7 = arith.constant dense<0.000000e+00> : vector<16x16x16xf32>
    %46 = tpu.matmul %45, %29, %cst_7 {dimension_numbers = #tpu.dot_dimension_numbers<[2], [1], [1], [2], [0, 0, 0, 1, 1, 2], [0], [0]>} : vector<16x16x16xf32>, vector<16x16x16xf32>, vector<16x16x16xf32> -> vector<16x16x16xf32>
    "tpu.trace_stop"() : () -> ()
    %47 = vector.extract_strided_slice %46 {offsets = [0, 0, 0], sizes = [4, 16, 16], strides = [1, 1, 1]} : vector<16x16x16xf32> to vector<4x16x16xf32>
    %48 = vector.shape_cast %47 : vector<4x16x16xf32> to vector<64x16xf32>
    %49 = vector.extract_strided_slice %46 {offsets = [4, 0, 0], sizes = [4, 16, 16], strides = [1, 1, 1]} : vector<16x16x16xf32> to vector<4x16x16xf32>
    %50 = vector.shape_cast %49 : vector<4x16x16xf32> to vector<64x16xf32>
    %51 = vector.extract_strided_slice %46 {offsets = [8, 0, 0], sizes = [4, 16, 16], strides = [1, 1, 1]} : vector<16x16x16xf32> to vector<4x16x16xf32>
    %52 = vector.shape_cast %51 : vector<4x16x16xf32> to vector<64x16xf32>
    %53 = vector.extract_strided_slice %46 {offsets = [12, 0, 0], sizes = [4, 16, 16], strides = [1, 1, 1]} : vector<16x16x16xf32> to vector<4x16x16xf32>
    %54 = vector.shape_cast %53 : vector<4x16x16xf32> to vector<64x16xf32>
    %55 = tpu.concatenate %48, %50, %52, %54 in 1 : vector<64x16xf32>, vector<64x16xf32>, vector<64x16xf32>, vector<64x16xf32> -> vector<64x64xf32>
    %c0_8 = arith.constant 0 : index
    %c0_9 = arith.constant 0 : index
    %56 = vector.load %arg3[%c0_8, %c0_9] : memref<64x128xf32, #tpu.memory_space<vmem>>, vector<64x128xf32>
    %cst_10 = arith.constant dense<0.000000e+00> : vector<64x128xf32>
    %57 = tpu.matmul %55, %56, %cst_10 {dimension_numbers = #tpu.dot_dimension_numbers<[1], [0], [0], [1], [0, 0, 1, 1], [], []>} : vector<64x64xf32>, vector<64x128xf32>, vector<64x128xf32> -> vector<64x128xf32>
    %c0_11 = arith.constant 0 : index
    %c0_12 = arith.constant 0 : index
    %58 = vector.load %arg4[%c0_11, %c0_12] : memref<1x128xf32, #tpu.memory_space<vmem>>, vector<1x128xf32>
    %59 = vector.broadcast %58 : vector<1x128xf32> to vector<64x128xf32>
    %60 = arith.addf %57, %59 : vector<64x128xf32>
    %c0_13 = arith.constant 0 : index
    %c0_14 = arith.constant 0 : index
    %61 = vector.load %arg5[%c0_13, %c0_14] : memref<64x128xf32, #tpu.memory_space<vmem>>, vector<64x128xf32>
    tpu.vector_store %arg5[%c0_13, %c0_14], %60 {strides = array<i32>} : memref<64x128xf32, #tpu.memory_space<vmem>>, vector<64x128xf32>,
    return
  }
  func.func @transform_0(%arg0: i32) -> (i32, i32) {
    %c0_i32 = arith.constant 0 : i32
    %c0_i32_0 = arith.constant 0 : i32
    return %arg0, %c0_i32 : i32, i32
  }
  func.func @transform_1(%arg0: i32) -> (i32, i32) {
    %c0_i32 = arith.constant 0 : i32
    %c0_i32_0 = arith.constant 0 : i32
    %c0_i32_1 = arith.constant 0 : i32
    return %c0_i32, %c0_i32_0 : i32, i32
  }
  func.func @transform_2(%arg0: i32) -> (i32, i32) {
    %c0_i32 = arith.constant 0 : i32
    %c0_i32_0 = arith.constant 0 : i32
    %c0_i32_1 = arith.constant 0 : i32
    return %c0_i32, %c0_i32_0 : i32, i32
  }
  func.func @transform_3(%arg0: i32) -> (i32, i32) {
    %c0_i32 = arith.constant 0 : i32
    %c0_i32_0 = arith.constant 0 : i32
    %c0_i32_1 = arith.constant 0 : i32
    return %c0_i32, %c0_i32_0 : i32, i32
  }
  func.func @transform_4(%arg0: i32) -> (i32, i32) {
    %c0_i32 = arith.constant 0 : i32
    %c0_i32_0 = arith.constant 0 : i32
    return %arg0, %c0_i32 : i32, i32
  }
}

</mosaic_0001>

<llo_original>
// kernel: multi_head_attention.1
$region0: #{multi_head_attention.1}
  #allocation0 [shape = 'u32[]', space=smem, size = 0x4, offset = 0x4, fixed_abs, tag = 'smem constant byte address 0x4 - core index']
  #allocation1 [shape = 'u32[72,128]{1,0:T(1,128)}', space=vmem, size = 0x9000, scoped, tag = 'internal scratch']
  %s0 = inlined_call_operand.hbm [shape: f32[64,64], index: 0, kind: input, shape index: {}]
  %s1 = inlined_call_operand.hbm [shape: f32[64,192], index: 1, kind: input, shape index: {}]
  %s2 = inlined_call_operand.hbm [shape: f32[64,128], index: 2, kind: input, shape index: {}]
  %s3 = inlined_call_operand.vmem [shape: f32[1,128], index: 3, kind: input, shape index: {}]
  %s4 = inlined_call_operand.hbm [shape: f32[64,128], index: 4, kind: output, shape index: {}]
  %s5 = sld [smem:[#allocation0]]
  $region38: #{multi_head_attention.1} parent=0
    _
  %s7 = ssub.s32 1, %s5
  %s8 = scalar_select 0, %s7, %s5
  $region1: #{multi_head_attention.1} parent=0
    #allocation2 [shape = 'u8[32768]{0}', space=vmem, size = 0x8000, scoped, tag = 'input window, operand 0, single buffered']
    #allocation3 [shape = 's32[1]{0}', space=sflag, size = 0x4, scoped, tag = 'scoped memory for multi_head_attention.1']
    #allocation4 [shape = 's32[1]{0}', space=sflag, size = 0x4, scoped, tag = 'scoped memory for multi_head_attention.1']
    #allocation5 [shape = 'u8[65536]{0}', space=vmem, size = 0x10000, scoped, tag = 'input window, operand 1, single buffered']
    #allocation6 [shape = 's32[1]{0}', space=sflag, size = 0x4, scoped, tag = 'scoped memory for multi_head_attention.1']
    #allocation7 [shape = 'u8[32768]{0}', space=vmem, size = 0x8000, scoped, tag = 'input window, operand 2, single buffered']
    #allocation8 [shape = 'u8[32768]{0}', space=vmem, size = 0x8000, scoped, tag = 'output window, operand 0, single buffered']
    %9 = vsyncpa [#allocation3], 0
    %10 = vsyncpa [#allocation6], 0
    %11 = vsyncpa [#allocation4], 0
    // Predicated region
    $region2: #{multi_head_attention.1} parent=1 // pred_check
      _
    $region3: #{multi_head_attention.1} parent=1 // pred_check_branch
      %13 = sbr.rel (0) target = $region5
    $region4: #{multi_head_attention.1} parent=1 // pred_region
      %15 = vsyncadd [#allocation3], 0
      %s16 = sshll.u32 %s0, 4
      %s17 = int_to_ptr.hbm [resolvable:$true] %s16
      %s18 = sshll.u32 [#allocation2], 4
      %s19 = int_to_ptr.vmem [resolvable:$true] %s18
      %24 = dma.hbm_to_vmem [thread:$0]  %s17, 1024, %s19, [#allocation3], 128, 128, 8
    $region5: #{multi_head_attention.1} parent=1 // pred_fallthru
      _
    // Predicated region
    $region6: #{multi_head_attention.1} parent=1 // pred_check
      _
    $region7: #{multi_head_attention.1} parent=1 // pred_check_branch
      %26 = sbr.rel (0) target = $region9
    $region8: #{multi_head_attention.1} parent=1 // pred_region
      %28 = vsyncadd [#allocation6], 0
      %s29 = sshll.u32 %s1, 4
      %s30 = int_to_ptr.hbm [resolvable:$true] %s29
      %s31 = sshll.u32 [#allocation5], 4
      %s32 = int_to_ptr.vmem [resolvable:$true] %s31
      %37 = dma.hbm_to_vmem [thread:$0]  %s30, 2048, %s32, [#allocation6], 256, 256, 16
    $region9: #{multi_head_attention.1} parent=1 // pred_fallthru
      _
    // Predicated region
    $region10: #{multi_head_attention.1} parent=1 // pred_check
      _
    $region11: #{multi_head_attention.1} parent=1 // pred_check_branch
      %39 = sbr.rel (0) target = $region13
    $region12: #{multi_head_attention.1} parent=1 // pred_region
      %41 = vsyncadd [#allocation6], 0
      %s42 = sshll.u32 %s2, 4
      %s43 = int_to_ptr.hbm [resolvable:$true] %s42
      %s44 = sshll.u32 [#allocation7], 4
      %s45 = int_to_ptr.vmem [resolvable:$true] %s44
      %50 = dma.hbm_to_vmem [thread:$0]  %s43, 1024, %s45, [#allocation6], 128, 128, 8
    $region13: #{multi_head_attention.1} parent=1 // pred_fallthru
      _
    // Predicated region
    $region14: #{multi_head_attention.1} parent=1 // pred_check
      _
    $region15: #{multi_head_attention.1} parent=1 // pred_check_branch
      %52 = sbr.rel (0) target = $region17
    $region16: #{multi_head_attention.1} parent=1 // pred_region
      _
    $region17: #{multi_head_attention.1} parent=1 // pred_fallthru
      _
    // Predicated region
    $region18: #{multi_head_attention.1} parent=1 // pred_check
      _
    $region19: #{multi_head_attention.1} parent=1 // pred_check_branch
      %54 = sbr.rel (0) target = $region21
    $region20: #{multi_head_attention.1} parent=1 // pred_region
      %56 = dma.done [#allocation3], 1024
    $region21: #{multi_head_attention.1} parent=1 // pred_fallthru
      _
    // Predicated region
    $region22: #{multi_head_attention.1} parent=1 // pred_check
      _
    $region23: #{multi_head_attention.1} parent=1 // pred_check_branch
      %58 = sbr.rel (0) target = $region25
    $region24: #{multi_head_attention.1} parent=1 // pred_region
      %60 = dma.done [#allocation6], 2048
    $region25: #{multi_head_attention.1} parent=1 // pred_fallthru
      _
    // Predicated region
    $region26: #{multi_head_attention.1} parent=1 // pred_check
      _
    $region27: #{multi_head_attention.1} parent=1 // pred_check_branch
      %62 = sbr.rel (0) target = $region29
    $region28: #{multi_head_attention.1} parent=1 // pred_region
      %64 = dma.done [#allocation6], 1024
    $region29: #{multi_head_attention.1} parent=1 // pred_fallthru
      _
    %v65 = vld [vmem:[#allocation2] sm:$0xff]
    %v66 = vld [vmem:[#allocation2 + $0x8] sm:$0xff]
    %v67 = vld [vmem:[#allocation2 + $0x10] sm:$0xff]
    %v68 = vld [vmem:[#allocation2 + $0x18] sm:$0xff]
    %v69 = vld [vmem:[#allocation2 + $0x20] sm:$0xff]
    %v70 = vld [vmem:[#allocation2 + $0x28] sm:$0xff]
    %v71 = vld [vmem:[#allocation2 + $0x30] sm:$0xff]
    %v72 = vld [vmem:[#allocation2 + $0x38] sm:$0xff]
    %v73 = vld [vmem:[#allocation5] sm:$0xff]
    %v74 = vld [vmem:[#allocation5 + $0x8] sm:$0xff]
    %v75 = vld [vmem:[#allocation5 + $0x10] sm:$0xff]
    %v76 = vld [vmem:[#allocation5 + $0x18] sm:$0xff]
    %v77 = vld [vmem:[#allocation5 + $0x20] sm:$0xff]
    %v78 = vld [vmem:[#allocation5 + $0x28] sm:$0xff]
    %v79 = vld [vmem:[#allocation5 + $0x30] sm:$0xff]
    %v80 = vld [vmem:[#allocation5 + $0x38] sm:$0xff]
    %v81 = vld [vmem:[#allocation5 + $0x40] sm:$0xff]
    %v82 = vld [vmem:[#allocation5 + $0x48] sm:$0xff]
    %v83 = vld [vmem:[#allocation5 + $0x50] sm:$0xff]
    %v84 = vld [vmem:[#allocation5 + $0x58] sm:$0xff]
    %v85 = vld [vmem:[#allocation5 + $0x60] sm:$0xff]
    %v86 = vld [vmem:[#allocation5 + $0x68] sm:$0xff]
    %v87 = vld [vmem:[#allocation5 + $0x70] sm:$0xff]
    %v88 = vld [vmem:[#allocation5 + $0x78] sm:$0xff]
    %vm89 = vcmask 523264
    %v91 = vsel %vm89, %v65, 0
    %v94 = vsel %vm89, %v66, 0
    %v97 = vsel %vm89, %v67, 0
    %v100 = vsel %vm89, %v68, 0
    %v103 = vsel %vm89, %v69, 0
    %v106 = vsel %vm89, %v70, 0
    %v109 = vsel %vm89, %v71, 0
    %v112 = vsel %vm89, %v72, 0
    %114 = vmatpush.msra.mxu0 0.0
    %115 = vmatpush.msra.mxu0 0.0
    %116 = vmatpush.msra.mxu0 0.0
    %117 = vmatpush.msra.mxu0 0.0
    %118 = vmatpush.msra.mxu0 0.0
    %119 = vmatpush.msra.mxu0 0.0
    %120 = vmatpush.msra.mxu0 0.0
    %121 = vmatpush.msra.mxu0 0.0
    %122 = vmatpush.msra.mxu0 %v87
    %123 = vmatpush.msra.mxu0 %v85
    %124 = vmatpush.msra.mxu0 %v83
    %125 = vmatpush.msra.mxu0 %v81
    %126 = vmatpush.msra.mxu0 %v79
    %127 = vmatpush.msra.mxu0 %v77
    %128 = vmatpush.msra.mxu0 %v75
    %129 = vmatpush.msra.mxu0 %v73
    %130 = vmatmul.f32.gmra.mxu0 %v91
    %v131 = vpop.f32.mrf.mxu0
    %v132 = vadd.f32 0.0, %v131
    %133 = vmatmul.f32.gmra.mxu0 %v94
    %v134 = vpop.f32.mrf.mxu0
    %v135 = vadd.f32 0.0, %v134
    %136 = vmatmul.f32.gmra.mxu0 %v97
    %v137 = vpop.f32.mrf.mxu0
    %v138 = vadd.f32 0.0, %v137
    %139 = vmatmul.f32.gmra.mxu0 %v100
    %v140 = vpop.f32.mrf.mxu0
    %v141 = vadd.f32 0.0, %v140
    %142 = vmatmul.f32.gmra.mxu0 %v103
    %v143 = vpop.f32.mrf.mxu0
    %v144 = vadd.f32 0.0, %v143
    %145 = vmatmul.f32.gmra.mxu0 %v106
    %v146 = vpop.f32.mrf.mxu0
    %v147 = vadd.f32 0.0, %v146
    %148 = vmatmul.f32.gmra.mxu0 %v109
    %v149 = vpop.f32.mrf.mxu0
    %v150 = vadd.f32 0.0, %v149
    %151 = vmatmul.f32.gmra.mxu0 %v112
    %v152 = vpop.f32.mrf.mxu0
    %v153 = vadd.f32 0.0, %v152
    %154 = vdwg.mxu0
    %155 = vmatpush.msra.mxu0 0.0
    %156 = vmatpush.msra.mxu0 0.0
    %157 = vmatpush.msra.mxu0 0.0
    %158 = vmatpush.msra.mxu0 0.0
    %159 = vmatpush.msra.mxu0 0.0
    %160 = vmatpush.msra.mxu0 0.0
    %161 = vmatpush.msra.mxu0 0.0
    %162 = vmatpush.msra.mxu0 0.0
    %163 = vmatpush.msra.mxu0 %v88
    %164 = vmatpush.msra.mxu0 %v86
    %165 = vmatpush.msra.mxu0 %v84
    %166 = vmatpush.msra.mxu0 %v82
    %167 = vmatpush.msra.mxu0 %v80
    %168 = vmatpush.msra.mxu0 %v78
    %169 = vmatpush.msra.mxu0 %v76
    %170 = vmatpush.msra.mxu0 %v74
    %171 = vmatmul.f32.gmra.mxu0 %v91
    %v172 = vpop.f32.mrf.mxu0
    %v173 = vadd.f32 0.0, %v172
    %174 = vmatmul.f32.gmra.mxu0 %v94
    %v175 = vpop.f32.mrf.mxu0
    %v176 = vadd.f32 0.0, %v175
    %177 = vmatmul.f32.gmra.mxu0 %v97
    %v178 = vpop.f32.mrf.mxu0
    %v179 = vadd.f32 0.0, %v178
    %180 = vmatmul.f32.gmra.mxu0 %v100
    %v181 = vpop.f32.mrf.mxu0
    %v182 = vadd.f32 0.0, %v181
    %183 = vmatmul.f32.gmra.mxu0 %v103
    %v184 = vpop.f32.mrf.mxu0
    %v185 = vadd.f32 0.0, %v184
    %186 = vmatmul.f32.gmra.mxu0 %v106
    %v187 = vpop.f32.mrf.mxu0
    %v188 = vadd.f32 0.0, %v187
    %189 = vmatmul.f32.gmra.mxu0 %v109
    %v190 = vpop.f32.mrf.mxu0
    %v191 = vadd.f32 0.0, %v190
    %192 = vmatmul.f32.gmra.mxu0 %v112
    %v193 = vpop.f32.mrf.mxu0
    %v194 = vadd.f32 0.0, %v193
    %195 = vdwg.mxu0
    %204 = vrot.lane.b32.xlu0 %v132, 112
    %v205 = vpop.permute.xlu0 %204
    %206 = vrot.lane.b32.xlu0 %v135, 112
    %v207 = vpop.permute.xlu0 %206
    %208 = vrot.lane.b32.xlu0 %v138, 112
    %v209 = vpop.permute.xlu0 %208
    %210 = vrot.lane.b32.xlu0 %v141, 112
    %v211 = vpop.permute.xlu0 %210
    %212 = vrot.lane.b32.xlu0 %v144, 112
    %v213 = vpop.permute.xlu0 %212
    %214 = vrot.lane.b32.xlu0 %v147, 112
    %v215 = vpop.permute.xlu0 %214
    %216 = vrot.lane.b32.xlu0 %v150, 112
    %v217 = vpop.permute.xlu0 %216
    %218 = vrot.lane.b32.xlu0 %v153, 112
    %v219 = vpop.permute.xlu0 %218
    %220 = vrot.lane.b32.xlu0 %v132, 96
    %v221 = vpop.permute.xlu0 %220
    %222 = vrot.lane.b32.xlu0 %v135, 96
    %v223 = vpop.permute.xlu0 %222
    %224 = vrot.lane.b32.xlu0 %v138, 96
    %v225 = vpop.permute.xlu0 %224
    %226 = vrot.lane.b32.xlu0 %v141, 96
    %v227 = vpop.permute.xlu0 %226
    %228 = vrot.lane.b32.xlu0 %v144, 96
    %v229 = vpop.permute.xlu0 %228
    %230 = vrot.lane.b32.xlu0 %v147, 96
    %v231 = vpop.permute.xlu0 %230
    %232 = vrot.lane.b32.xlu0 %v150, 96
    %v233 = vpop.permute.xlu0 %232
    %234 = vrot.lane.b32.xlu0 %v153, 96
    %v235 = vpop.permute.xlu0 %234
    %236 = vrot.lane.b32.xlu0 %v132, 80
    %v237 = vpop.permute.xlu0 %236
    %238 = vrot.lane.b32.xlu0 %v135, 80
    %v239 = vpop.permute.xlu0 %238
    %240 = vrot.lane.b32.xlu0 %v138, 80
    %v241 = vpop.permute.xlu0 %240
    %242 = vrot.lane.b32.xlu0 %v141, 80
    %v243 = vpop.permute.xlu0 %242
    %244 = vrot.lane.b32.xlu0 %v144, 80
    %v245 = vpop.permute.xlu0 %244
    %246 = vrot.lane.b32.xlu0 %v147, 80
    %v247 = vpop.permute.xlu0 %246
    %248 = vrot.lane.b32.xlu0 %v150, 80
    %v249 = vpop.permute.xlu0 %248
    %250 = vrot.lane.b32.xlu0 %v153, 80
    %v251 = vpop.permute.xlu0 %250
    %260 = vrot.lane.b32.xlu0 %v173, 112
    %v261 = vpop.permute.xlu0 %260
    %262 = vrot.lane.b32.xlu0 %v176, 112
    %v263 = vpop.permute.xlu0 %262
    %264 = vrot.lane.b32.xlu0 %v179, 112
    %v265 = vpop.permute.xlu0 %264
    %266 = vrot.lane.b32.xlu0 %v182, 112
    %v267 = vpop.permute.xlu0 %266
    %268 = vrot.lane.b32.xlu0 %v185, 112
    %v269 = vpop.permute.xlu0 %268
    %270 = vrot.lane.b32.xlu0 %v188, 112
    %v271 = vpop.permute.xlu0 %270
    %272 = vrot.lane.b32.xlu0 %v191, 112
    %v273 = vpop.permute.xlu0 %272
    %274 = vrot.lane.b32.xlu0 %v194, 112
    %v275 = vpop.permute.xlu0 %274
    %284 = vrot.lane.b32.xlu0 %v173, 96
    %v285 = vpop.permute.xlu0 %284
    %286 = vrot.lane.b32.xlu0 %v176, 96
    %v287 = vpop.permute.xlu0 %286
    %288 = vrot.lane.b32.xlu0 %v179, 96
    %v289 = vpop.permute.xlu0 %288
    %290 = vrot.lane.b32.xlu0 %v182, 96
    %v291 = vpop.permute.xlu0 %290
    %292 = vrot.lane.b32.xlu0 %v185, 96
    %v293 = vpop.permute.xlu0 %292
    %294 = vrot.lane.b32.xlu0 %v188, 96
    %v295 = vpop.permute.xlu0 %294
    %296 = vrot.lane.b32.xlu0 %v191, 96
    %v297 = vpop.permute.xlu0 %296
    %298 = vrot.lane.b32.xlu0 %v194, 96
    %v299 = vpop.permute.xlu0 %298
    %308 = vrot.lane.b32.xlu0 %v173, 80
    %v309 = vpop.permute.xlu0 %308
    %310 = vrot.lane.b32.xlu0 %v176, 80
    %v311 = vpop.permute.xlu0 %310
    %312 = vrot.lane.b32.xlu0 %v179, 80
    %v313 = vpop.permute.xlu0 %312
    %314 = vrot.lane.b32.xlu0 %v182, 80
    %v315 = vpop.permute.xlu0 %314
    %316 = vrot.lane.b32.xlu0 %v185, 80
    %v317 = vpop.permute.xlu0 %316
    %318 = vrot.lane.b32.xlu0 %v188, 80
    %v319 = vpop.permute.xlu0 %318
    %320 = vrot.lane.b32.xlu0 %v191, 80
    %v321 = vpop.permute.xlu0 %320
    %322 = vrot.lane.b32.xlu0 %v194, 80
    %v323 = vpop.permute.xlu0 %322
    %332 = vrot.lane.b32.xlu0 %v132, 64
    %v333 = vpop.permute.xlu0 %332
    %334 = vrot.lane.b32.xlu0 %v135, 64
    %v335 = vpop.permute.xlu0 %334
    %vm336 = vcmask 130048
    %v337 = vsel %vm336, %v132, 0
    %v339 = vsel %vm336, %v135, 0
    %v341 = vsel %vm336, %v333, 0
    %v343 = vsel %vm336, %v335, 0
    %345 = vmatpush.xpose.msra.mxu0 0.0
    %346 = vmatpush.xpose.msra.mxu0 0.0
    %347 = vmatpush.xpose.msra.mxu0 0.0
    %348 = vmatpush.xpose.msra.mxu0 0.0
    %349 = vmatpush.xpose.msra.mxu0 0.0
    %350 = vmatpush.xpose.msra.mxu0 0.0
    %351 = vmatpush.xpose.msra.mxu0 0.0
    %352 = vmatpush.xpose.msra.mxu0 0.0
    %353 = vmatpush.xpose.msra.mxu0 0.0
    %354 = vmatpush.xpose.msra.mxu0 0.0
    %355 = vmatpush.xpose.msra.mxu0 0.0
    %356 = vmatpush.xpose.msra.mxu0 0.0
    %357 = vmatpush.xpose.msra.mxu0 0.0
    %358 = vmatpush.xpose.msra.mxu0 0.0
    %359 = vmatpush.xpose.msra.mxu0 %v343
    %360 = vmatpush.xpose.msra.mxu0 %v341
    %361 = vmatmul.f32.gmra.mxu0 %v337
    %v362 = vpop.f32.mrf.mxu0
    %v363 = vadd.f32 0.0, %v362
    %364 = vmatmul.f32.gmra.mxu0 %v339
    %v365 = vpop.f32.mrf.mxu0
    %v366 = vadd.f32 0.0, %v365
    %367 = vdwg.mxu0
    %368 = vrot.lane.b32.xlu0 %v138, 64
    %v369 = vpop.permute.xlu0 %368
    %370 = vrot.lane.b32.xlu0 %v141, 64
    %v371 = vpop.permute.xlu0 %370
    %v372 = vsel %vm336, %v138, 0
    %v374 = vsel %vm336, %v141, 0
    %v376 = vsel %vm336, %v369, 0
    %v378 = vsel %vm336, %v371, 0
    %380 = vmatpush.xpose.msra.mxu0 0.0
    %381 = vmatpush.xpose.msra.mxu0 0.0
    %382 = vmatpush.xpose.msra.mxu0 0.0
    %383 = vmatpush.xpose.msra.mxu0 0.0
    %384 = vmatpush.xpose.msra.mxu0 0.0
    %385 = vmatpush.xpose.msra.mxu0 0.0
    %386 = vmatpush.xpose.msra.mxu0 0.0
    %387 = vmatpush.xpose.msra.mxu0 0.0
    %388 = vmatpush.xpose.msra.mxu0 0.0
    %389 = vmatpush.xpose.msra.mxu0 0.0
    %390 = vmatpush.xpose.msra.mxu0 0.0
    %391 = vmatpush.xpose.msra.mxu0 0.0
    %392 = vmatpush.xpose.msra.mxu0 0.0
    %393 = vmatpush.xpose.msra.mxu0 0.0
    %394 = vmatpush.xpose.msra.mxu0 %v378
    %395 = vmatpush.xpose.msra.mxu0 %v376
    %396 = vmatmul.f32.gmra.mxu0 %v372
    %v397 = vpop.f32.mrf.mxu0
    %v398 = vadd.f32 0.0, %v397
    %399 = vmatmul.f32.gmra.mxu0 %v374
    %v400 = vpop.f32.mrf.mxu0
    %v401 = vadd.f32 0.0, %v400
    %402 = vdwg.mxu0
    %403 = vrot.lane.b32.xlu0 %v144, 64
    %v404 = vpop.permute.xlu0 %403
    %405 = vrot.lane.b32.xlu0 %v147, 64
    %v406 = vpop.permute.xlu0 %405
    %v407 = vsel %vm336, %v144, 0
    %v409 = vsel %vm336, %v147, 0
    %v411 = vsel %vm336, %v404, 0
    %v413 = vsel %vm336, %v406, 0
    %415 = vmatpush.xpose.msra.mxu0 0.0
    %416 = vmatpush.xpose.msra.mxu0 0.0
    %417 = vmatpush.xpose.msra.mxu0 0.0
    %418 = vmatpush.xpose.msra.mxu0 0.0
    %419 = vmatpush.xpose.msra.mxu0 0.0
    %420 = vmatpush.xpose.msra.mxu0 0.0
    %421 = vmatpush.xpose.msra.mxu0 0.0
    %422 = vmatpush.xpose.msra.mxu0 0.0
    %423 = vmatpush.xpose.msra.mxu0 0.0
    %424 = vmatpush.xpose.msra.mxu0 0.0
    %425 = vmatpush.xpose.msra.mxu0 0.0
    %426 = vmatpush.xpose.msra.mxu0 0.0
    %427 = vmatpush.xpose.msra.mxu0 0.0
    %428 = vmatpush.xpose.msra.mxu0 0.0
    %429 = vmatpush.xpose.msra.mxu0 %v413
    %430 = vmatpush.xpose.msra.mxu0 %v411
    %431 = vmatmul.f32.gmra.mxu0 %v407
    %v432 = vpop.f32.mrf.mxu0
    %v433 = vadd.f32 0.0, %v432
    %434 = vmatmul.f32.gmra.mxu0 %v409
    %v435 = vpop.f32.mrf.mxu0
    %v436 = vadd.f32 0.0, %v435
    %437 = vdwg.mxu0
    %438 = vrot.lane.b32.xlu0 %v150, 64
    %v439 = vpop.permute.xlu0 %438
    %440 = vrot.lane.b32.xlu0 %v153, 64
    %v441 = vpop.permute.xlu0 %440
    %v442 = vsel %vm336, %v150, 0
    %v444 = vsel %vm336, %v153, 0
    %v446 = vsel %vm336, %v439, 0
    %v448 = vsel %vm336, %v441, 0
    %450 = vmatpush.xpose.msra.mxu0 0.0
    %451 = vmatpush.xpose.msra.mxu0 0.0
    %452 = vmatpush.xpose.msra.mxu0 0.0
    %453 = vmatpush.xpose.msra.mxu0 0.0
    %454 = vmatpush.xpose.msra.mxu0 0.0
    %455 = vmatpush.xpose.msra.mxu0 0.0
    %456 = vmatpush.xpose.msra.mxu0 0.0
    %457 = vmatpush.xpose.msra.mxu0 0.0
    %458 = vmatpush.xpose.msra.mxu0 0.0
    %459 = vmatpush.xpose.msra.mxu0 0.0
    %460 = vmatpush.xpose.msra.mxu0 0.0
    %461 = vmatpush.xpose.msra.mxu0 0.0
    %462 = vmatpush.xpose.msra.mxu0 0.0
    %463 = vmatpush.xpose.msra.mxu0 0.0
    %464 = vmatpush.xpose.msra.mxu0 %v448
    %465 = vmatpush.xpose.msra.mxu0 %v446
    %466 = vmatmul.f32.gmra.mxu0 %v442
    %v467 = vpop.f32.mrf.mxu0
    %v468 = vadd.f32 0.0, %v467
    %469 = vmatmul.f32.gmra.mxu0 %v444
    %v470 = vpop.f32.mrf.mxu0
    %v471 = vadd.f32 0.0, %v470
    %472 = vdwg.mxu0
    %473 = vrot.lane.b32.xlu0 %v205, 64
    %v474 = vpop.permute.xlu0 %473
    %475 = vrot.lane.b32.xlu0 %v207, 64
    %v476 = vpop.permute.xlu0 %475
    %v477 = vsel %vm336, %v205, 0
    %v479 = vsel %vm336, %v207, 0
    %v481 = vsel %vm336, %v474, 0
    %v483 = vsel %vm336, %v476, 0
    %485 = vmatpush.xpose.msra.mxu0 0.0
    %486 = vmatpush.xpose.msra.mxu0 0.0
    %487 = vmatpush.xpose.msra.mxu0 0.0
    %488 = vmatpush.xpose.msra.mxu0 0.0
    %489 = vmatpush.xpose.msra.mxu0 0.0
    %490 = vmatpush.xpose.msra.mxu0 0.0
    %491 = vmatpush.xpose.msra.mxu0 0.0
    %492 = vmatpush.xpose.msra.mxu0 0.0
    %493 = vmatpush.xpose.msra.mxu0 0.0
    %494 = vmatpush.xpose.msra.mxu0 0.0
    %495 = vmatpush.xpose.msra.mxu0 0.0
    %496 = vmatpush.xpose.msra.mxu0 0.0
    %497 = vmatpush.xpose.msra.mxu0 0.0
    %498 = vmatpush.xpose.msra.mxu0 0.0
    %499 = vmatpush.xpose.msra.mxu0 %v483
    %500 = vmatpush.xpose.msra.mxu0 %v481
    %501 = vmatmul.f32.gmra.mxu0 %v477
    %v502 = vpop.f32.mrf.mxu0
    %v503 = vadd.f32 0.0, %v502
    %504 = vmatmul.f32.gmra.mxu0 %v479
    %v505 = vpop.f32.mrf.mxu0
    %v506 = vadd.f32 0.0, %v505
    %507 = vdwg.mxu0
    %508 = vrot.lane.b32.xlu0 %v209, 64
    %v509 = vpop.permute.xlu0 %508
    %510 = vrot.lane.b32.xlu0 %v211, 64
    %v511 = vpop.permute.xlu0 %510
    %v512 = vsel %vm336, %v209, 0
    %v514 = vsel %vm336, %v211, 0
    %v516 = vsel %vm336, %v509, 0
    %v518 = vsel %vm336, %v511, 0
    %520 = vmatpush.xpose.msra.mxu0 0.0
    %521 = vmatpush.xpose.msra.mxu0 0.0
    %522 = vmatpush.xpose.msra.mxu0 0.0
    %523 = vmatpush.xpose.msra.mxu0 0.0
    %524 = vmatpush.xpose.msra.mxu0 0.0
    %525 = vmatpush.xpose.msra.mxu0 0.0
    %526 = vmatpush.xpose.msra.mxu0 0.0
    %527 = vmatpush.xpose.msra.mxu0 0.0
    %528 = vmatpush.xpose.msra.mxu0 0.0
    %529 = vmatpush.xpose.msra.mxu0 0.0
    %530 = vmatpush.xpose.msra.mxu0 0.0
    %531 = vmatpush.xpose.msra.mxu0 0.0
    %532 = vmatpush.xpose.msra.mxu0 0.0
    %533 = vmatpush.xpose.msra.mxu0 0.0
    %534 = vmatpush.xpose.msra.mxu0 %v518
    %535 = vmatpush.xpose.msra.mxu0 %v516
    %536 = vmatmul.f32.gmra.mxu0 %v512
    %v537 = vpop.f32.mrf.mxu0
    %v538 = vadd.f32 0.0, %v537
    %539 = vmatmul.f32.gmra.mxu0 %v514
    %v540 = vpop.f32.mrf.mxu0
    %v541 = vadd.f32 0.0, %v540
    %542 = vdwg.mxu0
    %543 = vrot.lane.b32.xlu0 %v213, 64
    %v544 = vpop.permute.xlu0 %543
    %545 = vrot.lane.b32.xlu0 %v215, 64
    %v546 = vpop.permute.xlu0 %545
    %v547 = vsel %vm336, %v213, 0
    %v549 = vsel %vm336, %v215, 0
    %v551 = vsel %vm336, %v544, 0
    %v553 = vsel %vm336, %v546, 0
    %555 = vmatpush.xpose.msra.mxu0 0.0
    %556 = vmatpush.xpose.msra.mxu0 0.0
    %557 = vmatpush.xpose.msra.mxu0 0.0
    %558 = vmatpush.xpose.msra.mxu0 0.0
    %559 = vmatpush.xpose.msra.mxu0 0.0
    %560 = vmatpush.xpose.msra.mxu0 0.0
    %561 = vmatpush.xpose.msra.mxu0 0.0
    %562 = vmatpush.xpose.msra.mxu0 0.0
    %563 = vmatpush.xpose.msra.mxu0 0.0
    %564 = vmatpush.xpose.msra.mxu0 0.0
    %565 = vmatpush.xpose.msra.mxu0 0.0
    %566 = vmatpush.xpose.msra.mxu0 0.0
    %567 = vmatpush.xpose.msra.mxu0 0.0
    %568 = vmatpush.xpose.msra.mxu0 0.0
    %569 = vmatpush.xpose.msra.mxu0 %v553
    %570 = vmatpush.xpose.msra.mxu0 %v551
    %571 = vmatmul.f32.gmra.mxu0 %v547
    %v572 = vpop.f32.mrf.mxu0
    %v573 = vadd.f32 0.0, %v572
    %574 = vmatmul.f32.gmra.mxu0 %v549
    %v575 = vpop.f32.mrf.mxu0
    %v576 = vadd.f32 0.0, %v575
    %577 = vdwg.mxu0
    %578 = vrot.lane.b32.xlu0 %v217, 64
    %v579 = vpop.permute.xlu0 %578
    %580 = vrot.lane.b32.xlu0 %v219, 64
    %v581 = vpop.permute.xlu0 %580
    %v582 = vsel %vm336, %v217, 0
    %v584 = vsel %vm336, %v219, 0
    %v586 = vsel %vm336, %v579, 0
    %v588 = vsel %vm336, %v581, 0
    %590 = vmatpush.xpose.msra.mxu0 0.0
    %591 = vmatpush.xpose.msra.mxu0 0.0
    %592 = vmatpush.xpose.msra.mxu0 0.0
    %593 = vmatpush.xpose.msra.mxu0 0.0
    %594 = vmatpush.xpose.msra.mxu0 0.0
    %595 = vmatpush.xpose.msra.mxu0 0.0
    %596 = vmatpush.xpose.msra.mxu0 0.0
    %597 = vmatpush.xpose.msra.mxu0 0.0
    %598 = vmatpush.xpose.msra.mxu0 0.0
    %599 = vmatpush.xpose.msra.mxu0 0.0
    %600 = vmatpush.xpose.msra.mxu0 0.0
    %601 = vmatpush.xpose.msra.mxu0 0.0
    %602 = vmatpush.xpose.msra.mxu0 0.0
    %603 = vmatpush.xpose.msra.mxu0 0.0
    %604 = vmatpush.xpose.msra.mxu0 %v588
    %605 = vmatpush.xpose.msra.mxu0 %v586
    %606 = vmatmul.f32.gmra.mxu0 %v582
    %v607 = vpop.f32.mrf.mxu0
    %v608 = vadd.f32 0.0, %v607
    %609 = vmatmul.f32.gmra.mxu0 %v584
    %v610 = vpop.f32.mrf.mxu0
    %v611 = vadd.f32 0.0, %v610
    %612 = vdwg.mxu0
    %613 = vrot.lane.b32.xlu0 %v221, 64
    %v614 = vpop.permute.xlu0 %613
    %615 = vrot.lane.b32.xlu0 %v223, 64
    %v616 = vpop.permute.xlu0 %615
    %v617 = vsel %vm336, %v221, 0
    %v619 = vsel %vm336, %v223, 0
    %v621 = vsel %vm336, %v614, 0
    %v623 = vsel %vm336, %v616, 0
    %625 = vmatpush.xpose.msra.mxu0 0.0
    %626 = vmatpush.xpose.msra.mxu0 0.0
    %627 = vmatpush.xpose.msra.mxu0 0.0
    %628 = vmatpush.xpose.msra.mxu0 0.0
    %629 = vmatpush.xpose.msra.mxu0 0.0
    %630 = vmatpush.xpose.msra.mxu0 0.0
    %631 = vmatpush.xpose.msra.mxu0 0.0
    %632 = vmatpush.xpose.msra.mxu0 0.0
    %633 = vmatpush.xpose.msra.mxu0 0.0
    %634 = vmatpush.xpose.msra.mxu0 0.0
    %635 = vmatpush.xpose.msra.mxu0 0.0
    %636 = vmatpush.xpose.msra.mxu0 0.0
    %637 = vmatpush.xpose.msra.mxu0 0.0
    %638 = vmatpush.xpose.msra.mxu0 0.0
    %639 = vmatpush.xpose.msra.mxu0 %v623
    %640 = vmatpush.xpose.msra.mxu0 %v621
    %641 = vmatmul.f32.gmra.mxu0 %v617
    %v642 = vpop.f32.mrf.mxu0
    %v643 = vadd.f32 0.0, %v642
    %644 = vmatmul.f32.gmra.mxu0 %v619
    %v645 = vpop.f32.mrf.mxu0
    %v646 = vadd.f32 0.0, %v645
    %647 = vdwg.mxu0
    %648 = vrot.lane.b32.xlu0 %v225, 64
    %v649 = vpop.permute.xlu0 %648
    %650 = vrot.lane.b32.xlu0 %v227, 64
    %v651 = vpop.permute.xlu0 %650
    %v652 = vsel %vm336, %v225, 0
    %v654 = vsel %vm336, %v227, 0
    %v656 = vsel %vm336, %v649, 0
    %v658 = vsel %vm336, %v651, 0
    %660 = vmatpush.xpose.msra.mxu0 0.0
    %661 = vmatpush.xpose.msra.mxu0 0.0
    %662 = vmatpush.xpose.msra.mxu0 0.0
    %663 = vmatpush.xpose.msra.mxu0 0.0
    %664 = vmatpush.xpose.msra.mxu0 0.0
    %665 = vmatpush.xpose.msra.mxu0 0.0
    %666 = vmatpush.xpose.msra.mxu0 0.0
    %667 = vmatpush.xpose.msra.mxu0 0.0
    %668 = vmatpush.xpose.msra.mxu0 0.0
    %669 = vmatpush.xpose.msra.mxu0 0.0
    %670 = vmatpush.xpose.msra.mxu0 0.0
    %671 = vmatpush.xpose.msra.mxu0 0.0
    %672 = vmatpush.xpose.msra.mxu0 0.0
    %673 = vmatpush.xpose.msra.mxu0 0.0
    %674 = vmatpush.xpose.msra.mxu0 %v658
    %675 = vmatpush.xpose.msra.mxu0 %v656
    %676 = vmatmul.f32.gmra.mxu0 %v652
    %v677 = vpop.f32.mrf.mxu0
    %v678 = vadd.f32 0.0, %v677
    %679 = vmatmul.f32.gmra.mxu0 %v654
    %v680 = vpop.f32.mrf.mxu0
    %v681 = vadd.f32 0.0, %v680
    %682 = vdwg.mxu0
    %683 = vrot.lane.b32.xlu0 %v229, 64
    %v684 = vpop.permute.xlu0 %683
    %685 = vrot.lane.b32.xlu0 %v231, 64
    %v686 = vpop.permute.xlu0 %685
    %v687 = vsel %vm336, %v229, 0
    %v689 = vsel %vm336, %v231, 0
    %v691 = vsel %vm336, %v684, 0
    %v693 = vsel %vm336, %v686, 0
    %695 = vmatpush.xpose.msra.mxu0 0.0
    %696 = vmatpush.xpose.msra.mxu0 0.0
    %697 = vmatpush.xpose.msra.mxu0 0.0
    %698 = vmatpush.xpose.msra.mxu0 0.0
    %699 = vmatpush.xpose.msra.mxu0 0.0
    %700 = vmatpush.xpose.msra.mxu0 0.0
    %701 = vmatpush.xpose.msra.mxu0 0.0
    %702 = vmatpush.xpose.msra.mxu0 0.0
    %703 = vmatpush.xpose.msra.mxu0 0.0
    %704 = vmatpush.xpose.msra.mxu0 0.0
    %705 = vmatpush.xpose.msra.mxu0 0.0
    %706 = vmatpush.xpose.msra.mxu0 0.0
    %707 = vmatpush.xpose.msra.mxu0 0.0
    %708 = vmatpush.xpose.msra.mxu0 0.0
    %709 = vmatpush.xpose.msra.mxu0 %v693
    %710 = vmatpush.xpose.msra.mxu0 %v691
    %711 = vmatmul.f32.gmra.mxu0 %v687
    %v712 = vpop.f32.mrf.mxu0
    %v713 = vadd.f32 0.0, %v712
    %714 = vmatmul.f32.gmra.mxu0 %v689
    %v715 = vpop.f32.mrf.mxu0
    %v716 = vadd.f32 0.0, %v715
    %717 = vdwg.mxu0
    %718 = vrot.lane.b32.xlu0 %v233, 64
    %v719 = vpop.permute.xlu0 %718
    %720 = vrot.lane.b32.xlu0 %v235, 64
    %v721 = vpop.permute.xlu0 %720
    %v722 = vsel %vm336, %v233, 0
    %v724 = vsel %vm336, %v235, 0
    %v726 = vsel %vm336, %v719, 0
    %v728 = vsel %vm336, %v721, 0
    %730 = vmatpush.xpose.msra.mxu0 0.0
    %731 = vmatpush.xpose.msra.mxu0 0.0
    %732 = vmatpush.xpose.msra.mxu0 0.0
    %733 = vmatpush.xpose.msra.mxu0 0.0
    %734 = vmatpush.xpose.msra.mxu0 0.0
    %735 = vmatpush.xpose.msra.mxu0 0.0
    %736 = vmatpush.xpose.msra.mxu0 0.0
    %737 = vmatpush.xpose.msra.mxu0 0.0
    %738 = vmatpush.xpose.msra.mxu0 0.0
    %739 = vmatpush.xpose.msra.mxu0 0.0
    %740 = vmatpush.xpose.msra.mxu0 0.0
    %741 = vmatpush.xpose.msra.mxu0 0.0
    %742 = vmatpush.xpose.msra.mxu0 0.0
    %743 = vmatpush.xpose.msra.mxu0 0.0
    %744 = vmatpush.xpose.msra.mxu0 %v728
    %745 = vmatpush.xpose.msra.mxu0 %v726
    %746 = vmatmul.f32.gmra.mxu0 %v722
    %v747 = vpop.f32.mrf.mxu0
    %v748 = vadd.f32 0.0, %v747
    %749 = vmatmul.f32.gmra.mxu0 %v724
    %v750 = vpop.f32.mrf.mxu0
    %v751 = vadd.f32 0.0, %v750
    %752 = vdwg.mxu0
    %753 = vrot.lane.b32.xlu0 %v237, 64
    %v754 = vpop.permute.xlu0 %753
    %755 = vrot.lane.b32.xlu0 %v239, 64
    %v756 = vpop.permute.xlu0 %755
    %v757 = vsel %vm336, %v237, 0
    %v759 = vsel %vm336, %v239, 0
    %v761 = vsel %vm336, %v754, 0
    %v763 = vsel %vm336, %v756, 0
    %765 = vmatpush.xpose.msra.mxu0 0.0
    %766 = vmatpush.xpose.msra.mxu0 0.0
    %767 = vmatpush.xpose.msra.mxu0 0.0
    %768 = vmatpush.xpose.msra.mxu0 0.0
    %769 = vmatpush.xpose.msra.mxu0 0.0
    %770 = vmatpush.xpose.msra.mxu0 0.0
    %771 = vmatpush.xpose.msra.mxu0 0.0
    %772 = vmatpush.xpose.msra.mxu0 0.0
    %773 = vmatpush.xpose.msra.mxu0 0.0
    %774 = vmatpush.xpose.msra.mxu0 0.0
    %775 = vmatpush.xpose.msra.mxu0 0.0
    %776 = vmatpush.xpose.msra.mxu0 0.0
    %777 = vmatpush.xpose.msra.mxu0 0.0
    %778 = vmatpush.xpose.msra.mxu0 0.0
    %779 = vmatpush.xpose.msra.mxu0 %v763
    %780 = vmatpush.xpose.msra.mxu0 %v761
    %781 = vmatmul.f32.gmra.mxu0 %v757
    %v782 = vpop.f32.mrf.mxu0
    %v783 = vadd.f32 0.0, %v782
    %784 = vmatmul.f32.gmra.mxu0 %v759
    %v785 = vpop.f32.mrf.mxu0
    %v786 = vadd.f32 0.0, %v785
    %787 = vdwg.mxu0
    %788 = vrot.lane.b32.xlu0 %v241, 64
    %v789 = vpop.permute.xlu0 %788
    %790 = vrot.lane.b32.xlu0 %v243, 64
    %v791 = vpop.permute.xlu0 %790
    %v792 = vsel %vm336, %v241, 0
    %v794 = vsel %vm336, %v243, 0
    %v796 = vsel %vm336, %v789, 0
    %v798 = vsel %vm336, %v791, 0
    %800 = vmatpush.xpose.msra.mxu0 0.0
    %801 = vmatpush.xpose.msra.mxu0 0.0
    %802 = vmatpush.xpose.msra.mxu0 0.0
    %803 = vmatpush.xpose.msra.mxu0 0.0
    %804 = vmatpush.xpose.msra.mxu0 0.0
    %805 = vmatpush.xpose.msra.mxu0 0.0
    %806 = vmatpush.xpose.msra.mxu0 0.0
    %807 = vmatpush.xpose.msra.mxu0 0.0
    %808 = vmatpush.xpose.msra.mxu0 0.0
    %809 = vmatpush.xpose.msra.mxu0 0.0
    %810 = vmatpush.xpose.msra.mxu0 0.0
    %811 = vmatpush.xpose.msra.mxu0 0.0
    %812 = vmatpush.xpose.msra.mxu0 0.0
    %813 = vmatpush.xpose.msra.mxu0 0.0
    %814 = vmatpush.xpose.msra.mxu0 %v798
    %815 = vmatpush.xpose.msra.mxu0 %v796
    %816 = vmatmul.f32.gmra.mxu0 %v792
    %v817 = vpop.f32.mrf.mxu0
    %v818 = vadd.f32 0.0, %v817
    %819 = vmatmul.f32.gmra.mxu0 %v794
    %v820 = vpop.f32.mrf.mxu0
    %v821 = vadd.f32 0.0, %v820
    %822 = vdwg.mxu0
    %823 = vrot.lane.b32.xlu0 %v245, 64
    %v824 = vpop.permute.xlu0 %823
    %825 = vrot.lane.b32.xlu0 %v247, 64
    %v826 = vpop.permute.xlu0 %825
    %v827 = vsel %vm336, %v245, 0
    %v829 = vsel %vm336, %v247, 0
    %v831 = vsel %vm336, %v824, 0
    %v833 = vsel %vm336, %v826, 0
    %835 = vmatpush.xpose.msra.mxu0 0.0
    %836 = vmatpush.xpose.msra.mxu0 0.0
    %837 = vmatpush.xpose.msra.mxu0 0.0
    %838 = vmatpush.xpose.msra.mxu0 0.0
    %839 = vmatpush.xpose.msra.mxu0 0.0
    %840 = vmatpush.xpose.msra.mxu0 0.0
    %841 = vmatpush.xpose.msra.mxu0 0.0
    %842 = vmatpush.xpose.msra.mxu0 0.0
    %843 = vmatpush.xpose.msra.mxu0 0.0
    %844 = vmatpush.xpose.msra.mxu0 0.0
    %845 = vmatpush.xpose.msra.mxu0 0.0
    %846 = vmatpush.xpose.msra.mxu0 0.0
    %847 = vmatpush.xpose.msra.mxu0 0.0
    %848 = vmatpush.xpose.msra.mxu0 0.0
    %849 = vmatpush.xpose.msra.mxu0 %v833
    %850 = vmatpush.xpose.msra.mxu0 %v831
    %851 = vmatmul.f32.gmra.mxu0 %v827
    %v852 = vpop.f32.mrf.mxu0
    %v853 = vadd.f32 0.0, %v852
    %854 = vmatmul.f32.gmra.mxu0 %v829
    %v855 = vpop.f32.mrf.mxu0
    %v856 = vadd.f32 0.0, %v855
    %857 = vdwg.mxu0
    %858 = vrot.lane.b32.xlu0 %v249, 64
    %v859 = vpop.permute.xlu0 %858
    %860 = vrot.lane.b32.xlu0 %v251, 64
    %v861 = vpop.permute.xlu0 %860
    %v862 = vsel %vm336, %v249, 0
    %v864 = vsel %vm336, %v251, 0
    %v866 = vsel %vm336, %v859, 0
    %v868 = vsel %vm336, %v861, 0
    %870 = vmatpush.xpose.msra.mxu0 0.0
    %871 = vmatpush.xpose.msra.mxu0 0.0
    %872 = vmatpush.xpose.msra.mxu0 0.0
    %873 = vmatpush.xpose.msra.mxu0 0.0
    %874 = vmatpush.xpose.msra.mxu0 0.0
    %875 = vmatpush.xpose.msra.mxu0 0.0
    %876 = vmatpush.xpose.msra.mxu0 0.0
    %877 = vmatpush.xpose.msra.mxu0 0.0
    %878 = vmatpush.xpose.msra.mxu0 0.0
    %879 = vmatpush.xpose.msra.mxu0 0.0
    %880 = vmatpush.xpose.msra.mxu0 0.0
    %881 = vmatpush.xpose.msra.mxu0 0.0
    %882 = vmatpush.xpose.msra.mxu0 0.0
    %883 = vmatpush.xpose.msra.mxu0 0.0
    %884 = vmatpush.xpose.msra.mxu0 %v868
    %885 = vmatpush.xpose.msra.mxu0 %v866
    %886 = vmatmul.f32.gmra.mxu0 %v862
    %v887 = vpop.f32.mrf.mxu0
    %v888 = vadd.f32 0.0, %v887
    %889 = vmatmul.f32.gmra.mxu0 %v864
    %v890 = vpop.f32.mrf.mxu0
    %v891 = vadd.f32 0.0, %v890
    %892 = vdwg.mxu0
    %v893 = vlaneseq
    %v894 = vshrl.u32 %v893, 7
    %v895 = vadd.s32 %v894, 8
    %v896 = vlaneseq
    %v897 = vand.u32 %v896, 127
    %vm898 = vcmp.ge.s32.totalorder %v894, %v897
    %vm899 = vcmp.ge.s32.totalorder %v895, %v897
    %v900 = vsel %vm898, %v363, -1e+30
    %v901 = vsel %vm899, %v366, -1e+30
    %v902 = vsel %vm898, %v398, -1e+30
    %v903 = vsel %vm899, %v401, -1e+30
    %v904 = vsel %vm898, %v433, -1e+30
    %v905 = vsel %vm899, %v436, -1e+30
    %v906 = vsel %vm898, %v468, -1e+30
    %v907 = vsel %vm899, %v471, -1e+30
    %v908 = vsel %vm898, %v503, -1e+30
    %v909 = vsel %vm899, %v506, -1e+30
    %v910 = vsel %vm898, %v538, -1e+30
    %v911 = vsel %vm899, %v541, -1e+30
    %v912 = vsel %vm898, %v573, -1e+30
    %v913 = vsel %vm899, %v576, -1e+30
    %v914 = vsel %vm898, %v608, -1e+30
    %v915 = vsel %vm899, %v611, -1e+30
    %v916 = vsel %vm898, %v643, -1e+30
    %v917 = vsel %vm899, %v646, -1e+30
    %v918 = vsel %vm898, %v678, -1e+30
    %v919 = vsel %vm899, %v681, -1e+30
    %v920 = vsel %vm898, %v713, -1e+30
    %v921 = vsel %vm899, %v716, -1e+30
    %v922 = vsel %vm898, %v748, -1e+30
    %v923 = vsel %vm899, %v751, -1e+30
    %v924 = vsel %vm898, %v783, -1e+30
    %v925 = vsel %vm899, %v786, -1e+30
    %v926 = vsel %vm898, %v818, -1e+30
    %v927 = vsel %vm899, %v821, -1e+30
    %v928 = vsel %vm898, %v853, -1e+30
    %v929 = vsel %vm899, %v856, -1e+30
    %v930 = vsel %vm898, %v888, -1e+30
    %v931 = vsel %vm899, %v891, -1e+30
    %v932 = vsel %vm336, %v900, -inf
    %933 = vmax.xlane.f32.xlu0 %v932
    %v934 = vpop.xlane.xlu0 %933
    %v935 = vsel %vm336, %v901, -inf
    %936 = vmax.xlane.f32.xlu0 %v935
    %v937 = vpop.xlane.xlu0 %936
    %v938 = vsel %vm336, %v902, -inf
    %939 = vmax.xlane.f32.xlu0 %v938
    %v940 = vpop.xlane.xlu0 %939
    %v941 = vsel %vm336, %v903, -inf
    %942 = vmax.xlane.f32.xlu0 %v941
    %v943 = vpop.xlane.xlu0 %942
    %v944 = vsel %vm336, %v904, -inf
    %945 = vmax.xlane.f32.xlu0 %v944
    %v946 = vpop.xlane.xlu0 %945
    %v947 = vsel %vm336, %v905, -inf
    %948 = vmax.xlane.f32.xlu0 %v947
    %v949 = vpop.xlane.xlu0 %948
    %v950 = vsel %vm336, %v906, -inf
    %951 = vmax.xlane.f32.xlu0 %v950
    %v952 = vpop.xlane.xlu0 %951
    %v953 = vsel %vm336, %v907, -inf
    %954 = vmax.xlane.f32.xlu0 %v953
    %v955 = vpop.xlane.xlu0 %954
    %v956 = vsel %vm336, %v908, -inf
    %957 = vmax.xlane.f32.xlu0 %v956
    %v958 = vpop.xlane.xlu0 %957
    %v959 = vsel %vm336, %v909, -inf
    %960 = vmax.xlane.f32.xlu0 %v959
    %v961 = vpop.xlane.xlu0 %960
    %v962 = vsel %vm336, %v910, -inf
    %963 = vmax.xlane.f32.xlu0 %v962
    %v964 = vpop.xlane.xlu0 %963
    %v965 = vsel %vm336, %v911, -inf
    %966 = vmax.xlane.f32.xlu0 %v965
    %v967 = vpop.xlane.xlu0 %966
    %v968 = vsel %vm336, %v912, -inf
    %969 = vmax.xlane.f32.xlu0 %v968
    %v970 = vpop.xlane.xlu0 %969
    %v971 = vsel %vm336, %v913, -inf
    %972 = vmax.xlane.f32.xlu0 %v971
    %v973 = vpop.xlane.xlu0 %972
    %v974 = vsel %vm336, %v914, -inf
    %975 = vmax.xlane.f32.xlu0 %v974
    %v976 = vpop.xlane.xlu0 %975
    %v977 = vsel %vm336, %v915, -inf
    %978 = vmax.xlane.f32.xlu0 %v977
    %v979 = vpop.xlane.xlu0 %978
    %v980 = vsel %vm336, %v916, -inf
    %981 = vmax.xlane.f32.xlu0 %v980
    %v982 = vpop.xlane.xlu0 %981
    %v983 = vsel %vm336, %v917, -inf
    %984 = vmax.xlane.f32.xlu0 %v983
    %v985 = vpop.xlane.xlu0 %984
    %v986 = vsel %vm336, %v918, -inf
    %987 = vmax.xlane.f32.xlu0 %v986
    %v988 = vpop.xlane.xlu0 %987
    %v989 = vsel %vm336, %v919, -inf
    %990 = vmax.xlane.f32.xlu0 %v989
    %v991 = vpop.xlane.xlu0 %990
    %v992 = vsel %vm336, %v920, -inf
    %993 = vmax.xlane.f32.xlu0 %v992
    %v994 = vpop.xlane.xlu0 %993
    %v995 = vsel %vm336, %v921, -inf
    %996 = vmax.xlane.f32.xlu0 %v995
    %v997 = vpop.xlane.xlu0 %996
    %v998 = vsel %vm336, %v922, -inf
    %999 = vmax.xlane.f32.xlu0 %v998
    %v1000 = vpop.xlane.xlu0 %999
    %v1001 = vsel %vm336, %v923, -inf
    %1002 = vmax.xlane.f32.xlu0 %v1001
    %v1003 = vpop.xlane.xlu0 %1002
    %v1004 = vsel %vm336, %v924, -inf
    %1005 = vmax.xlane.f32.xlu0 %v1004
    %v1006 = vpop.xlane.xlu0 %1005
    %v1007 = vsel %vm336, %v925, -inf
    %1008 = vmax.xlane.f32.xlu0 %v1007
    %v1009 = vpop.xlane.xlu0 %1008
    %v1010 = vsel %vm336, %v926, -inf
    %1011 = vmax.xlane.f32.xlu0 %v1010
    %v1012 = vpop.xlane.xlu0 %1011
    %v1013 = vsel %vm336, %v927, -inf
    %1014 = vmax.xlane.f32.xlu0 %v1013
    %v1015 = vpop.xlane.xlu0 %1014
    %v1016 = vsel %vm336, %v928, -inf
    %1017 = vmax.xlane.f32.xlu0 %v1016
    %v1018 = vpop.xlane.xlu0 %1017
    %v1019 = vsel %vm336, %v929, -inf
    %1020 = vmax.xlane.f32.xlu0 %v1019
    %v1021 = vpop.xlane.xlu0 %1020
    %v1022 = vsel %vm336, %v930, -inf
    %1023 = vmax.xlane.f32.xlu0 %v1022
    %v1024 = vpop.xlane.xlu0 %1023
    %v1025 = vsel %vm336, %v931, -inf
    %1026 = vmax.xlane.f32.xlu0 %v1025
    %v1027 = vpop.xlane.xlu0 %1026
    %v1028 = vsub.f32 %v900, %v934
    %v1029 = vsub.f32 %v901, %v937
    %v1030 = vsub.f32 %v902, %v940
    %v1031 = vsub.f32 %v903, %v943
    %v1032 = vsub.f32 %v904, %v946
    %v1033 = vsub.f32 %v905, %v949
    %v1034 = vsub.f32 %v906, %v952
    %v1035 = vsub.f32 %v907, %v955
    %v1036 = vsub.f32 %v908, %v958
    %v1037 = vsub.f32 %v909, %v961
    %v1038 = vsub.f32 %v910, %v964
    %v1039 = vsub.f32 %v911, %v967
    %v1040 = vsub.f32 %v912, %v970
    %v1041 = vsub.f32 %v913, %v973
    %v1042 = vsub.f32 %v914, %v976
    %v1043 = vsub.f32 %v915, %v979
    %v1044 = vsub.f32 %v916, %v982
    %v1045 = vsub.f32 %v917, %v985
    %v1046 = vsub.f32 %v918, %v988
    %v1047 = vsub.f32 %v919, %v991
    %v1048 = vsub.f32 %v920, %v994
    %v1049 = vsub.f32 %v921, %v997
    %v1050 = vsub.f32 %v922, %v1000
    %v1051 = vsub.f32 %v923, %v1003
    %v1052 = vsub.f32 %v924, %v1006
    %v1053 = vsub.f32 %v925, %v1009
    %v1054 = vsub.f32 %v926, %v1012
    %v1055 = vsub.f32 %v927, %v1015
    %v1056 = vsub.f32 %v928, %v1018
    %v1057 = vsub.f32 %v929, %v1021
    %v1058 = vsub.f32 %v930, %v1024
    %v1059 = vsub.f32 %v931, %v1027
    %v1060 = vmul.f32 %v1028, 1.442695
    %v1061 = vpow.pop %v1060
    %v1062 = vmul.f32 %v1029, 1.442695
    %v1063 = vpow.pop %v1062
    %v1064 = vmul.f32 %v1030, 1.442695
    %v1065 = vpow.pop %v1064
    %v1066 = vmul.f32 %v1031, 1.442695
    %v1067 = vpow.pop %v1066
    %v1068 = vmul.f32 %v1032, 1.442695
    %v1069 = vpow.pop %v1068
    %v1070 = vmul.f32 %v1033, 1.442695
    %v1071 = vpow.pop %v1070
    %v1072 = vmul.f32 %v1034, 1.442695
    %v1073 = vpow.pop %v1072
    %v1074 = vmul.f32 %v1035, 1.442695
    %v1075 = vpow.pop %v1074
    %v1076 = vmul.f32 %v1036, 1.442695
    %v1077 = vpow.pop %v1076
    %v1078 = vmul.f32 %v1037, 1.442695
    %v1079 = vpow.pop %v1078
    %v1080 = vmul.f32 %v1038, 1.442695
    %v1081 = vpow.pop %v1080
    %v1082 = vmul.f32 %v1039, 1.442695
    %v1083 = vpow.pop %v1082
    %v1084 = vmul.f32 %v1040, 1.442695
    %v1085 = vpow.pop %v1084
    %v1086 = vmul.f32 %v1041, 1.442695
    %v1087 = vpow.pop %v1086
    %v1088 = vmul.f32 %v1042, 1.442695
    %v1089 = vpow.pop %v1088
    %v1090 = vmul.f32 %v1043, 1.442695
    %v1091 = vpow.pop %v1090
    %v1092 = vmul.f32 %v1044, 1.442695
    %v1093 = vpow.pop %v1092
    %v1094 = vmul.f32 %v1045, 1.442695
    %v1095 = vpow.pop %v1094
    %v1096 = vmul.f32 %v1046, 1.442695
    %v1097 = vpow.pop %v1096
    %v1098 = vmul.f32 %v1047, 1.442695
    %v1099 = vpow.pop %v1098
    %v1100 = vmul.f32 %v1048, 1.442695
    %v1101 = vpow.pop %v1100
    %v1102 = vmul.f32 %v1049, 1.442695
    %v1103 = vpow.pop %v1102
    %v1104 = vmul.f32 %v1050, 1.442695
    %v1105 = vpow.pop %v1104
    %v1106 = vmul.f32 %v1051, 1.442695
    %v1107 = vpow.pop %v1106
    %v1108 = vmul.f32 %v1052, 1.442695
    %v1109 = vpow.pop %v1108
    %v1110 = vmul.f32 %v1053, 1.442695
    %v1111 = vpow.pop %v1110
    %v1112 = vmul.f32 %v1054, 1.442695
    %v1113 = vpow.pop %v1112
    %v1114 = vmul.f32 %v1055, 1.442695
    %v1115 = vpow.pop %v1114
    %v1116 = vmul.f32 %v1056, 1.442695
    %v1117 = vpow.pop %v1116
    %v1118 = vmul.f32 %v1057, 1.442695
    %v1119 = vpow.pop %v1118
    %v1120 = vmul.f32 %v1058, 1.442695
    %v1121 = vpow.pop %v1120
    %v1122 = vmul.f32 %v1059, 1.442695
    %v1123 = vpow.pop %v1122
    %v1124 = vsel %vm336, %v1061, 0.0
    %1125 = vadd.xlane.f32.xlu0 %v1124
    %v1126 = vpop.xlane.xlu0 %1125
    %v1127 = vsel %vm336, %v1063, 0.0
    %1128 = vadd.xlane.f32.xlu0 %v1127
    %v1129 = vpop.xlane.xlu0 %1128
    %v1130 = vsel %vm336, %v1065, 0.0
    %1131 = vadd.xlane.f32.xlu0 %v1130
    %v1132 = vpop.xlane.xlu0 %1131
    %v1133 = vsel %vm336, %v1067, 0.0
    %1134 = vadd.xlane.f32.xlu0 %v1133
    %v1135 = vpop.xlane.xlu0 %1134
    %v1136 = vsel %vm336, %v1069, 0.0
    %1137 = vadd.xlane.f32.xlu0 %v1136
    %v1138 = vpop.xlane.xlu0 %1137
    %v1139 = vsel %vm336, %v1071, 0.0
    %1140 = vadd.xlane.f32.xlu0 %v1139
    %v1141 = vpop.xlane.xlu0 %1140
    %v1142 = vsel %vm336, %v1073, 0.0
    %1143 = vadd.xlane.f32.xlu0 %v1142
    %v1144 = vpop.xlane.xlu0 %1143
    %v1145 = vsel %vm336, %v1075, 0.0
    %1146 = vadd.xlane.f32.xlu0 %v1145
    %v1147 = vpop.xlane.xlu0 %1146
    %v1148 = vsel %vm336, %v1077, 0.0
    %1149 = vadd.xlane.f32.xlu0 %v1148
    %v1150 = vpop.xlane.xlu0 %1149
    %v1151 = vsel %vm336, %v1079, 0.0
    %1152 = vadd.xlane.f32.xlu0 %v1151
    %v1153 = vpop.xlane.xlu0 %1152
    %v1154 = vsel %vm336, %v1081, 0.0
    %1155 = vadd.xlane.f32.xlu0 %v1154
    %v1156 = vpop.xlane.xlu0 %1155
    %v1157 = vsel %vm336, %v1083, 0.0
    %1158 = vadd.xlane.f32.xlu0 %v1157
    %v1159 = vpop.xlane.xlu0 %1158
    %v1160 = vsel %vm336, %v1085, 0.0
    %1161 = vadd.xlane.f32.xlu0 %v1160
    %v1162 = vpop.xlane.xlu0 %1161
    %v1163 = vsel %vm336, %v1087, 0.0
    %1164 = vadd.xlane.f32.xlu0 %v1163
    %v1165 = vpop.xlane.xlu0 %1164
    %v1166 = vsel %vm336, %v1089, 0.0
    %1167 = vadd.xlane.f32.xlu0 %v1166
    %v1168 = vpop.xlane.xlu0 %1167
    %v1169 = vsel %vm336, %v1091, 0.0
    %1170 = vadd.xlane.f32.xlu0 %v1169
    %v1171 = vpop.xlane.xlu0 %1170
    %v1172 = vsel %vm336, %v1093, 0.0
    %1173 = vadd.xlane.f32.xlu0 %v1172
    %v1174 = vpop.xlane.xlu0 %1173
    %v1175 = vsel %vm336, %v1095, 0.0
    %1176 = vadd.xlane.f32.xlu0 %v1175
    %v1177 = vpop.xlane.xlu0 %1176
    %v1178 = vsel %vm336, %v1097, 0.0
    %1179 = vadd.xlane.f32.xlu0 %v1178
    %v1180 = vpop.xlane.xlu0 %1179
    %v1181 = vsel %vm336, %v1099, 0.0
    %1182 = vadd.xlane.f32.xlu0 %v1181
    %v1183 = vpop.xlane.xlu0 %1182
    %v1184 = vsel %vm336, %v1101, 0.0
    %1185 = vadd.xlane.f32.xlu0 %v1184
    %v1186 = vpop.xlane.xlu0 %1185
    %v1187 = vsel %vm336, %v1103, 0.0
    %1188 = vadd.xlane.f32.xlu0 %v1187
    %v1189 = vpop.xlane.xlu0 %1188
    %v1190 = vsel %vm336, %v1105, 0.0
    %1191 = vadd.xlane.f32.xlu0 %v1190
    %v1192 = vpop.xlane.xlu0 %1191
    %v1193 = vsel %vm336, %v1107, 0.0
    %1194 = vadd.xlane.f32.xlu0 %v1193
    %v1195 = vpop.xlane.xlu0 %1194
    %v1196 = vsel %vm336, %v1109, 0.0
    %1197 = vadd.xlane.f32.xlu0 %v1196
    %v1198 = vpop.xlane.xlu0 %1197
    %v1199 = vsel %vm336, %v1111, 0.0
    %1200 = vadd.xlane.f32.xlu0 %v1199
    %v1201 = vpop.xlane.xlu0 %1200
    %v1202 = vsel %vm336, %v1113, 0.0
    %1203 = vadd.xlane.f32.xlu0 %v1202
    %v1204 = vpop.xlane.xlu0 %1203
    %v1205 = vsel %vm336, %v1115, 0.0
    %1206 = vadd.xlane.f32.xlu0 %v1205
    %v1207 = vpop.xlane.xlu0 %1206
    %v1208 = vsel %vm336, %v1117, 0.0
    %1209 = vadd.xlane.f32.xlu0 %v1208
    %v1210 = vpop.xlane.xlu0 %1209
    %v1211 = vsel %vm336, %v1119, 0.0
    %1212 = vadd.xlane.f32.xlu0 %v1211
    %v1213 = vpop.xlane.xlu0 %1212
    %v1214 = vsel %vm336, %v1121, 0.0
    %1215 = vadd.xlane.f32.xlu0 %v1214
    %v1216 = vpop.xlane.xlu0 %1215
    %v1217 = vsel %vm336, %v1123, 0.0
    %1218 = vadd.xlane.f32.xlu0 %v1217
    %v1219 = vpop.xlane.xlu0 %1218
    %v1220 = vrcp.pop %v1126
    %v1221 = vrcp.pop %v1129
    %v1222 = vrcp.pop %v1132
    %v1223 = vrcp.pop %v1135
    %v1224 = vrcp.pop %v1138
    %v1225 = vrcp.pop %v1141
    %v1226 = vrcp.pop %v1144
    %v1227 = vrcp.pop %v1147
    %v1228 = vrcp.pop %v1150
    %v1229 = vrcp.pop %v1153
    %v1230 = vrcp.pop %v1156
    %v1231 = vrcp.pop %v1159
    %v1232 = vrcp.pop %v1162
    %v1233 = vrcp.pop %v1165
    %v1234 = vrcp.pop %v1168
    %v1235 = vrcp.pop %v1171
    %v1236 = vrcp.pop %v1174
    %v1237 = vrcp.pop %v1177
    %v1238 = vrcp.pop %v1180
    %v1239 = vrcp.pop %v1183
    %v1240 = vrcp.pop %v1186
    %v1241 = vrcp.pop %v1189
    %v1242 = vrcp.pop %v1192
    %v1243 = vrcp.pop %v1195
    %v1244 = vrcp.pop %v1198
    %v1245 = vrcp.pop %v1201
    %v1246 = vrcp.pop %v1204
    %v1247 = vrcp.pop %v1207
    %v1248 = vrcp.pop %v1210
    %v1249 = vrcp.pop %v1213
    %v1250 = vrcp.pop %v1216
    %v1251 = vrcp.pop %v1219
    %v1252 = vmul.f32 %v1061, %v1220
    %v1253 = vmul.f32 %v1063, %v1221
    %v1254 = vmul.f32 %v1065, %v1222
    %v1255 = vmul.f32 %v1067, %v1223
    %v1256 = vmul.f32 %v1069, %v1224
    %v1257 = vmul.f32 %v1071, %v1225
    %v1258 = vmul.f32 %v1073, %v1226
    %v1259 = vmul.f32 %v1075, %v1227
    %v1260 = vmul.f32 %v1077, %v1228
    %v1261 = vmul.f32 %v1079, %v1229
    %v1262 = vmul.f32 %v1081, %v1230
    %v1263 = vmul.f32 %v1083, %v1231
    %v1264 = vmul.f32 %v1085, %v1232
    %v1265 = vmul.f32 %v1087, %v1233
    %v1266 = vmul.f32 %v1089, %v1234
    %v1267 = vmul.f32 %v1091, %v1235
    %v1268 = vmul.f32 %v1093, %v1236
    %v1269 = vmul.f32 %v1095, %v1237
    %v1270 = vmul.f32 %v1097, %v1238
    %v1271 = vmul.f32 %v1099, %v1239
    %v1272 = vmul.f32 %v1101, %v1240
    %v1273 = vmul.f32 %v1103, %v1241
    %v1274 = vmul.f32 %v1105, %v1242
    %v1275 = vmul.f32 %v1107, %v1243
    %v1276 = vmul.f32 %v1109, %v1244
    %v1277 = vmul.f32 %v1111, %v1245
    %v1278 = vmul.f32 %v1113, %v1246
    %v1279 = vmul.f32 %v1115, %v1247
    %v1280 = vmul.f32 %v1117, %v1248
    %v1281 = vmul.f32 %v1119, %v1249
    %v1282 = vmul.f32 %v1121, %v1250
    %v1283 = vmul.f32 %v1123, %v1251
    %v1285 = vsel %vm336, %v1252, 0
    %v1288 = vsel %vm336, %v1253, 0
    %1290 = vmatpush.msra.mxu0 0.0
    %1291 = vmatpush.msra.mxu0 0.0
    %1292 = vmatpush.msra.mxu0 0.0
    %1293 = vmatpush.msra.mxu0 0.0
    %1294 = vmatpush.msra.mxu0 0.0
    %1295 = vmatpush.msra.mxu0 0.0
    %1296 = vmatpush.msra.mxu0 0.0
    %1297 = vmatpush.msra.mxu0 0.0
    %1298 = vmatpush.msra.mxu0 0.0
    %1299 = vmatpush.msra.mxu0 0.0
    %1300 = vmatpush.msra.mxu0 0.0
    %1301 = vmatpush.msra.mxu0 0.0
    %1302 = vmatpush.msra.mxu0 0.0
    %1303 = vmatpush.msra.mxu0 0.0
    %1304 = vmatpush.msra.mxu0 %v176
    %1305 = vmatpush.msra.mxu0 %v173
    %1306 = vmatmul.f32.gmra.mxu0 %v1285
    %v1307 = vpop.f32.mrf.mxu0
    %v1308 = vadd.f32 0.0, %v1307
    %1309 = vmatmul.f32.gmra.mxu0 %v1288
    %v1310 = vpop.f32.mrf.mxu0
    %v1311 = vadd.f32 0.0, %v1310
    %1312 = vdwg.mxu0
    %v1314 = vsel %vm336, %v1254, 0
    %v1317 = vsel %vm336, %v1255, 0
    %1319 = vmatpush.msra.mxu0 0.0
    %1320 = vmatpush.msra.mxu0 0.0
    %1321 = vmatpush.msra.mxu0 0.0
    %1322 = vmatpush.msra.mxu0 0.0
    %1323 = vmatpush.msra.mxu0 0.0
    %1324 = vmatpush.msra.mxu0 0.0
    %1325 = vmatpush.msra.mxu0 0.0
    %1326 = vmatpush.msra.mxu0 0.0
    %1327 = vmatpush.msra.mxu0 0.0
    %1328 = vmatpush.msra.mxu0 0.0
    %1329 = vmatpush.msra.mxu0 0.0
    %1330 = vmatpush.msra.mxu0 0.0
    %1331 = vmatpush.msra.mxu0 0.0
    %1332 = vmatpush.msra.mxu0 0.0
    %1333 = vmatpush.msra.mxu0 %v182
    %1334 = vmatpush.msra.mxu0 %v179
    %1335 = vmatmul.f32.gmra.mxu0 %v1314
    %v1336 = vpop.f32.mrf.mxu0
    %v1337 = vadd.f32 0.0, %v1336
    %1338 = vmatmul.f32.gmra.mxu0 %v1317
    %v1339 = vpop.f32.mrf.mxu0
    %v1340 = vadd.f32 0.0, %v1339
    %1341 = vdwg.mxu0
    %v1343 = vsel %vm336, %v1256, 0
    %v1346 = vsel %vm336, %v1257, 0
    %1348 = vmatpush.msra.mxu0 0.0
    %1349 = vmatpush.msra.mxu0 0.0
    %1350 = vmatpush.msra.mxu0 0.0
    %1351 = vmatpush.msra.mxu0 0.0
    %1352 = vmatpush.msra.mxu0 0.0
    %1353 = vmatpush.msra.mxu0 0.0
    %1354 = vmatpush.msra.mxu0 0.0
    %1355 = vmatpush.msra.mxu0 0.0
    %1356 = vmatpush.msra.mxu0 0.0
    %1357 = vmatpush.msra.mxu0 0.0
    %1358 = vmatpush.msra.mxu0 0.0
    %1359 = vmatpush.msra.mxu0 0.0
    %1360 = vmatpush.msra.mxu0 0.0
    %1361 = vmatpush.msra.mxu0 0.0
    %1362 = vmatpush.msra.mxu0 %v188
    %1363 = vmatpush.msra.mxu0 %v185
    %1364 = vmatmul.f32.gmra.mxu0 %v1343
    %v1365 = vpop.f32.mrf.mxu0
    %v1366 = vadd.f32 0.0, %v1365
    %1367 = vmatmul.f32.gmra.mxu0 %v1346
    %v1368 = vpop.f32.mrf.mxu0
    %v1369 = vadd.f32 0.0, %v1368
    %1370 = vdwg.mxu0
    %v1372 = vsel %vm336, %v1258, 0
    %v1375 = vsel %vm336, %v1259, 0
    %1377 = vmatpush.msra.mxu0 0.0
    %1378 = vmatpush.msra.mxu0 0.0
    %1379 = vmatpush.msra.mxu0 0.0
    %1380 = vmatpush.msra.mxu0 0.0
    %1381 = vmatpush.msra.mxu0 0.0
    %1382 = vmatpush.msra.mxu0 0.0
    %1383 = vmatpush.msra.mxu0 0.0
    %1384 = vmatpush.msra.mxu0 0.0
    %1385 = vmatpush.msra.mxu0 0.0
    %1386 = vmatpush.msra.mxu0 0.0
    %1387 = vmatpush.msra.mxu0 0.0
    %1388 = vmatpush.msra.mxu0 0.0
    %1389 = vmatpush.msra.mxu0 0.0
    %1390 = vmatpush.msra.mxu0 0.0
    %1391 = vmatpush.msra.mxu0 %v194
    %1392 = vmatpush.msra.mxu0 %v191
    %1393 = vmatmul.f32.gmra.mxu0 %v1372
    %v1394 = vpop.f32.mrf.mxu0
    %v1395 = vadd.f32 0.0, %v1394
    %1396 = vmatmul.f32.gmra.mxu0 %v1375
    %v1397 = vpop.f32.mrf.mxu0
    %v1398 = vadd.f32 0.0, %v1397
    %1399 = vdwg.mxu0
    %v1401 = vsel %vm336, %v1260, 0
    %v1404 = vsel %vm336, %v1261, 0
    %1406 = vmatpush.msra.mxu0 0.0
    %1407 = vmatpush.msra.mxu0 0.0
    %1408 = vmatpush.msra.mxu0 0.0
    %1409 = vmatpush.msra.mxu0 0.0
    %1410 = vmatpush.msra.mxu0 0.0
    %1411 = vmatpush.msra.mxu0 0.0
    %1412 = vmatpush.msra.mxu0 0.0
    %1413 = vmatpush.msra.mxu0 0.0
    %1414 = vmatpush.msra.mxu0 0.0
    %1415 = vmatpush.msra.mxu0 0.0
    %1416 = vmatpush.msra.mxu0 0.0
    %1417 = vmatpush.msra.mxu0 0.0
    %1418 = vmatpush.msra.mxu0 0.0
    %1419 = vmatpush.msra.mxu0 0.0
    %1420 = vmatpush.msra.mxu0 %v263
    %1421 = vmatpush.msra.mxu0 %v261
    %1422 = vmatmul.f32.gmra.mxu0 %v1401
    %v1423 = vpop.f32.mrf.mxu0
    %v1424 = vadd.f32 0.0, %v1423
    %1425 = vmatmul.f32.gmra.mxu0 %v1404
    %v1426 = vpop.f32.mrf.mxu0
    %v1427 = vadd.f32 0.0, %v1426
    %1428 = vdwg.mxu0
    %v1430 = vsel %vm336, %v1262, 0
    %v1433 = vsel %vm336, %v1263, 0
    %1435 = vmatpush.msra.mxu0 0.0
    %1436 = vmatpush.msra.mxu0 0.0
    %1437 = vmatpush.msra.mxu0 0.0
    %1438 = vmatpush.msra.mxu0 0.0
    %1439 = vmatpush.msra.mxu0 0.0
    %1440 = vmatpush.msra.mxu0 0.0
    %1441 = vmatpush.msra.mxu0 0.0
    %1442 = vmatpush.msra.mxu0 0.0
    %1443 = vmatpush.msra.mxu0 0.0
    %1444 = vmatpush.msra.mxu0 0.0
    %1445 = vmatpush.msra.mxu0 0.0
    %1446 = vmatpush.msra.mxu0 0.0
    %1447 = vmatpush.msra.mxu0 0.0
    %1448 = vmatpush.msra.mxu0 0.0
    %1449 = vmatpush.msra.mxu0 %v267
    %1450 = vmatpush.msra.mxu0 %v265
    %1451 = vmatmul.f32.gmra.mxu0 %v1430
    %v1452 = vpop.f32.mrf.mxu0
    %v1453 = vadd.f32 0.0, %v1452
    %1454 = vmatmul.f32.gmra.mxu0 %v1433
    %v1455 = vpop.f32.mrf.mxu0
    %v1456 = vadd.f32 0.0, %v1455
    %1457 = vdwg.mxu0
    %v1459 = vsel %vm336, %v1264, 0
    %v1462 = vsel %vm336, %v1265, 0
    %1464 = vmatpush.msra.mxu0 0.0
    %1465 = vmatpush.msra.mxu0 0.0
    %1466 = vmatpush.msra.mxu0 0.0
    %1467 = vmatpush.msra.mxu0 0.0
    %1468 = vmatpush.msra.mxu0 0.0
    %1469 = vmatpush.msra.mxu0 0.0
    %1470 = vmatpush.msra.mxu0 0.0
    %1471 = vmatpush.msra.mxu0 0.0
    %1472 = vmatpush.msra.mxu0 0.0
    %1473 = vmatpush.msra.mxu0 0.0
    %1474 = vmatpush.msra.mxu0 0.0
    %1475 = vmatpush.msra.mxu0 0.0
    %1476 = vmatpush.msra.mxu0 0.0
    %1477 = vmatpush.msra.mxu0 0.0
    %1478 = vmatpush.msra.mxu0 %v271
    %1479 = vmatpush.msra.mxu0 %v269
    %1480 = vmatmul.f32.gmra.mxu0 %v1459
    %v1481 = vpop.f32.mrf.mxu0
    %v1482 = vadd.f32 0.0, %v1481
    %1483 = vmatmul.f32.gmra.mxu0 %v1462
    %v1484 = vpop.f32.mrf.mxu0
    %v1485 = vadd.f32 0.0, %v1484
    %1486 = vdwg.mxu0
    %v1488 = vsel %vm336, %v1266, 0
    %v1491 = vsel %vm336, %v1267, 0
    %1493 = vmatpush.msra.mxu0 0.0
    %1494 = vmatpush.msra.mxu0 0.0
    %1495 = vmatpush.msra.mxu0 0.0
    %1496 = vmatpush.msra.mxu0 0.0
    %1497 = vmatpush.msra.mxu0 0.0
    %1498 = vmatpush.msra.mxu0 0.0
    %1499 = vmatpush.msra.mxu0 0.0
    %1500 = vmatpush.msra.mxu0 0.0
    %1501 = vmatpush.msra.mxu0 0.0
    %1502 = vmatpush.msra.mxu0 0.0
    %1503 = vmatpush.msra.mxu0 0.0
    %1504 = vmatpush.msra.mxu0 0.0
    %1505 = vmatpush.msra.mxu0 0.0
    %1506 = vmatpush.msra.mxu0 0.0
    %1507 = vmatpush.msra.mxu0 %v275
    %1508 = vmatpush.msra.mxu0 %v273
    %1509 = vmatmul.f32.gmra.mxu0 %v1488
    %v1510 = vpop.f32.mrf.mxu0
    %v1511 = vadd.f32 0.0, %v1510
    %1512 = vmatmul.f32.gmra.mxu0 %v1491
    %v1513 = vpop.f32.mrf.mxu0
    %v1514 = vadd.f32 0.0, %v1513
    %1515 = vdwg.mxu0
    %v1517 = vsel %vm336, %v1268, 0
    %v1520 = vsel %vm336, %v1269, 0
    %1522 = vmatpush.msra.mxu0 0.0
    %1523 = vmatpush.msra.mxu0 0.0
    %1524 = vmatpush.msra.mxu0 0.0
    %1525 = vmatpush.msra.mxu0 0.0
    %1526 = vmatpush.msra.mxu0 0.0
    %1527 = vmatpush.msra.mxu0 0.0
    %1528 = vmatpush.msra.mxu0 0.0
    %1529 = vmatpush.msra.mxu0 0.0
    %1530 = vmatpush.msra.mxu0 0.0
    %1531 = vmatpush.msra.mxu0 0.0
    %1532 = vmatpush.msra.mxu0 0.0
    %1533 = vmatpush.msra.mxu0 0.0
    %1534 = vmatpush.msra.mxu0 0.0
    %1535 = vmatpush.msra.mxu0 0.0
    %1536 = vmatpush.msra.mxu0 %v287
    %1537 = vmatpush.msra.mxu0 %v285
    %1538 = vmatmul.f32.gmra.mxu0 %v1517
    %v1539 = vpop.f32.mrf.mxu0
    %v1540 = vadd.f32 0.0, %v1539
    %1541 = vmatmul.f32.gmra.mxu0 %v1520
    %v1542 = vpop.f32.mrf.mxu0
    %v1543 = vadd.f32 0.0, %v1542
    %1544 = vdwg.mxu0
    %v1546 = vsel %vm336, %v1270, 0
    %v1549 = vsel %vm336, %v1271, 0
    %1551 = vmatpush.msra.mxu0 0.0
    %1552 = vmatpush.msra.mxu0 0.0
    %1553 = vmatpush.msra.mxu0 0.0
    %1554 = vmatpush.msra.mxu0 0.0
    %1555 = vmatpush.msra.mxu0 0.0
    %1556 = vmatpush.msra.mxu0 0.0
    %1557 = vmatpush.msra.mxu0 0.0
    %1558 = vmatpush.msra.mxu0 0.0
    %1559 = vmatpush.msra.mxu0 0.0
    %1560 = vmatpush.msra.mxu0 0.0
    %1561 = vmatpush.msra.mxu0 0.0
    %1562 = vmatpush.msra.mxu0 0.0
    %1563 = vmatpush.msra.mxu0 0.0
    %1564 = vmatpush.msra.mxu0 0.0
    %1565 = vmatpush.msra.mxu0 %v291
    %1566 = vmatpush.msra.mxu0 %v289
    %1567 = vmatmul.f32.gmra.mxu0 %v1546
    %v1568 = vpop.f32.mrf.mxu0
    %v1569 = vadd.f32 0.0, %v1568
    %1570 = vmatmul.f32.gmra.mxu0 %v1549
    %v1571 = vpop.f32.mrf.mxu0
    %v1572 = vadd.f32 0.0, %v1571
    %1573 = vdwg.mxu0
    %v1575 = vsel %vm336, %v1272, 0
    %v1578 = vsel %vm336, %v1273, 0
    %1580 = vmatpush.msra.mxu0 0.0
    %1581 = vmatpush.msra.mxu0 0.0
    %1582 = vmatpush.msra.mxu0 0.0
    %1583 = vmatpush.msra.mxu0 0.0
    %1584 = vmatpush.msra.mxu0 0.0
    %1585 = vmatpush.msra.mxu0 0.0
    %1586 = vmatpush.msra.mxu0 0.0
    %1587 = vmatpush.msra.mxu0 0.0
    %1588 = vmatpush.msra.mxu0 0.0
    %1589 = vmatpush.msra.mxu0 0.0
    %1590 = vmatpush.msra.mxu0 0.0
    %1591 = vmatpush.msra.mxu0 0.0
    %1592 = vmatpush.msra.mxu0 0.0
    %1593 = vmatpush.msra.mxu0 0.0
    %1594 = vmatpush.msra.mxu0 %v295
    %1595 = vmatpush.msra.mxu0 %v293
    %1596 = vmatmul.f32.gmra.mxu0 %v1575
    %v1597 = vpop.f32.mrf.mxu0
    %v1598 = vadd.f32 0.0, %v1597
    %1599 = vmatmul.f32.gmra.mxu0 %v1578
    %v1600 = vpop.f32.mrf.mxu0
    %v1601 = vadd.f32 0.0, %v1600
    %1602 = vdwg.mxu0
    %v1604 = vsel %vm336, %v1274, 0
    %v1607 = vsel %vm336, %v1275, 0
    %1609 = vmatpush.msra.mxu0 0.0
    %1610 = vmatpush.msra.mxu0 0.0
    %1611 = vmatpush.msra.mxu0 0.0
    %1612 = vmatpush.msra.mxu0 0.0
    %1613 = vmatpush.msra.mxu0 0.0
    %1614 = vmatpush.msra.mxu0 0.0
    %1615 = vmatpush.msra.mxu0 0.0
    %1616 = vmatpush.msra.mxu0 0.0
    %1617 = vmatpush.msra.mxu0 0.0
    %1618 = vmatpush.msra.mxu0 0.0
    %1619 = vmatpush.msra.mxu0 0.0
    %1620 = vmatpush.msra.mxu0 0.0
    %1621 = vmatpush.msra.mxu0 0.0
    %1622 = vmatpush.msra.mxu0 0.0
    %1623 = vmatpush.msra.mxu0 %v299
    %1624 = vmatpush.msra.mxu0 %v297
    %1625 = vmatmul.f32.gmra.mxu0 %v1604
    %v1626 = vpop.f32.mrf.mxu0
    %v1627 = vadd.f32 0.0, %v1626
    %1628 = vmatmul.f32.gmra.mxu0 %v1607
    %v1629 = vpop.f32.mrf.mxu0
    %v1630 = vadd.f32 0.0, %v1629
    %1631 = vdwg.mxu0
    %v1633 = vsel %vm336, %v1276, 0
    %v1636 = vsel %vm336, %v1277, 0
    %1638 = vmatpush.msra.mxu0 0.0
    %1639 = vmatpush.msra.mxu0 0.0
    %1640 = vmatpush.msra.mxu0 0.0
    %1641 = vmatpush.msra.mxu0 0.0
    %1642 = vmatpush.msra.mxu0 0.0
    %1643 = vmatpush.msra.mxu0 0.0
    %1644 = vmatpush.msra.mxu0 0.0
    %1645 = vmatpush.msra.mxu0 0.0
    %1646 = vmatpush.msra.mxu0 0.0
    %1647 = vmatpush.msra.mxu0 0.0
    %1648 = vmatpush.msra.mxu0 0.0
    %1649 = vmatpush.msra.mxu0 0.0
    %1650 = vmatpush.msra.mxu0 0.0
    %1651 = vmatpush.msra.mxu0 0.0
    %1652 = vmatpush.msra.mxu0 %v311
    %1653 = vmatpush.msra.mxu0 %v309
    %1654 = vmatmul.f32.gmra.mxu0 %v1633
    %v1655 = vpop.f32.mrf.mxu0
    %v1656 = vadd.f32 0.0, %v1655
    %1657 = vmatmul.f32.gmra.mxu0 %v1636
    %v1658 = vpop.f32.mrf.mxu0
    %v1659 = vadd.f32 0.0, %v1658
    %1660 = vdwg.mxu0
    %v1662 = vsel %vm336, %v1278, 0
    %v1665 = vsel %vm336, %v1279, 0
    %1667 = vmatpush.msra.mxu0 0.0
    %1668 = vmatpush.msra.mxu0 0.0
    %1669 = vmatpush.msra.mxu0 0.0
    %1670 = vmatpush.msra.mxu0 0.0
    %1671 = vmatpush.msra.mxu0 0.0
    %1672 = vmatpush.msra.mxu0 0.0
    %1673 = vmatpush.msra.mxu0 0.0
    %1674 = vmatpush.msra.mxu0 0.0
    %1675 = vmatpush.msra.mxu0 0.0
    %1676 = vmatpush.msra.mxu0 0.0
    %1677 = vmatpush.msra.mxu0 0.0
    %1678 = vmatpush.msra.mxu0 0.0
    %1679 = vmatpush.msra.mxu0 0.0
    %1680 = vmatpush.msra.mxu0 0.0
    %1681 = vmatpush.msra.mxu0 %v315
    %1682 = vmatpush.msra.mxu0 %v313
    %1683 = vmatmul.f32.gmra.mxu0 %v1662
    %v1684 = vpop.f32.mrf.mxu0
    %v1685 = vadd.f32 0.0, %v1684
    %1686 = vmatmul.f32.gmra.mxu0 %v1665
    %v1687 = vpop.f32.mrf.mxu0
    %v1688 = vadd.f32 0.0, %v1687
    %1689 = vdwg.mxu0
    %v1691 = vsel %vm336, %v1280, 0
    %v1694 = vsel %vm336, %v1281, 0
    %1696 = vmatpush.msra.mxu0 0.0
    %1697 = vmatpush.msra.mxu0 0.0
    %1698 = vmatpush.msra.mxu0 0.0
    %1699 = vmatpush.msra.mxu0 0.0
    %1700 = vmatpush.msra.mxu0 0.0
    %1701 = vmatpush.msra.mxu0 0.0
    %1702 = vmatpush.msra.mxu0 0.0
    %1703 = vmatpush.msra.mxu0 0.0
    %1704 = vmatpush.msra.mxu0 0.0
    %1705 = vmatpush.msra.mxu0 0.0
    %1706 = vmatpush.msra.mxu0 0.0
    %1707 = vmatpush.msra.mxu0 0.0
    %1708 = vmatpush.msra.mxu0 0.0
    %1709 = vmatpush.msra.mxu0 0.0
    %1710 = vmatpush.msra.mxu0 %v319
    %1711 = vmatpush.msra.mxu0 %v317
    %1712 = vmatmul.f32.gmra.mxu0 %v1691
    %v1713 = vpop.f32.mrf.mxu0
    %v1714 = vadd.f32 0.0, %v1713
    %1715 = vmatmul.f32.gmra.mxu0 %v1694
    %v1716 = vpop.f32.mrf.mxu0
    %v1717 = vadd.f32 0.0, %v1716
    %1718 = vdwg.mxu0
    %v1720 = vsel %vm336, %v1282, 0
    %v1723 = vsel %vm336, %v1283, 0
    %1725 = vmatpush.msra.mxu0 0.0
    %1726 = vmatpush.msra.mxu0 0.0
    %1727 = vmatpush.msra.mxu0 0.0
    %1728 = vmatpush.msra.mxu0 0.0
    %1729 = vmatpush.msra.mxu0 0.0
    %1730 = vmatpush.msra.mxu0 0.0
    %1731 = vmatpush.msra.mxu0 0.0
    %1732 = vmatpush.msra.mxu0 0.0
    %1733 = vmatpush.msra.mxu0 0.0
    %1734 = vmatpush.msra.mxu0 0.0
    %1735 = vmatpush.msra.mxu0 0.0
    %1736 = vmatpush.msra.mxu0 0.0
    %1737 = vmatpush.msra.mxu0 0.0
    %1738 = vmatpush.msra.mxu0 0.0
    %1739 = vmatpush.msra.mxu0 %v323
    %1740 = vmatpush.msra.mxu0 %v321
    %1741 = vmatmul.f32.gmra.mxu0 %v1720
    %v1742 = vpop.f32.mrf.mxu0
    %v1743 = vadd.f32 0.0, %v1742
    %1744 = vmatmul.f32.gmra.mxu0 %v1723
    %v1745 = vpop.f32.mrf.mxu0
    %v1746 = vadd.f32 0.0, %v1745
    %1747 = vdwg.mxu0
    %1756 = vrot.lane.b32.xlu0 %v1424, 16
    %v1757 = vpop.permute.xlu0 %1756
    %1758 = vrot.lane.b32.xlu0 %v1427, 16
    %v1759 = vpop.permute.xlu0 %1758
    %1760 = vrot.lane.b32.xlu0 %v1453, 16
    %v1761 = vpop.permute.xlu0 %1760
    %1762 = vrot.lane.b32.xlu0 %v1456, 16
    %v1763 = vpop.permute.xlu0 %1762
    %1764 = vrot.lane.b32.xlu0 %v1482, 16
    %v1765 = vpop.permute.xlu0 %1764
    %1766 = vrot.lane.b32.xlu0 %v1485, 16
    %v1767 = vpop.permute.xlu0 %1766
    %1768 = vrot.lane.b32.xlu0 %v1511, 16
    %v1769 = vpop.permute.xlu0 %1768
    %1770 = vrot.lane.b32.xlu0 %v1514, 16
    %v1771 = vpop.permute.xlu0 %1770
    %1788 = vrot.lane.b32.xlu0 %v1540, 32
    %v1789 = vpop.permute.xlu0 %1788
    %1790 = vrot.lane.b32.xlu0 %v1543, 32
    %v1791 = vpop.permute.xlu0 %1790
    %1792 = vrot.lane.b32.xlu0 %v1569, 32
    %v1793 = vpop.permute.xlu0 %1792
    %1794 = vrot.lane.b32.xlu0 %v1572, 32
    %v1795 = vpop.permute.xlu0 %1794
    %1796 = vrot.lane.b32.xlu0 %v1598, 32
    %v1797 = vpop.permute.xlu0 %1796
    %1798 = vrot.lane.b32.xlu0 %v1601, 32
    %v1799 = vpop.permute.xlu0 %1798
    %1800 = vrot.lane.b32.xlu0 %v1627, 32
    %v1801 = vpop.permute.xlu0 %1800
    %1802 = vrot.lane.b32.xlu0 %v1630, 32
    %v1803 = vpop.permute.xlu0 %1802
    %1820 = vrot.lane.b32.xlu0 %v1656, 48
    %v1821 = vpop.permute.xlu0 %1820
    %1822 = vrot.lane.b32.xlu0 %v1659, 48
    %v1823 = vpop.permute.xlu0 %1822
    %1824 = vrot.lane.b32.xlu0 %v1685, 48
    %v1825 = vpop.permute.xlu0 %1824
    %1826 = vrot.lane.b32.xlu0 %v1688, 48
    %v1827 = vpop.permute.xlu0 %1826
    %1828 = vrot.lane.b32.xlu0 %v1714, 48
    %v1829 = vpop.permute.xlu0 %1828
    %1830 = vrot.lane.b32.xlu0 %v1717, 48
    %v1831 = vpop.permute.xlu0 %1830
    %1832 = vrot.lane.b32.xlu0 %v1743, 48
    %v1833 = vpop.permute.xlu0 %1832
    %1834 = vrot.lane.b32.xlu0 %v1746, 48
    %v1835 = vpop.permute.xlu0 %1834
    %v1844 = vsel %vm336, %v1308, %v1757
    %v1845 = vsel %vm336, %v1311, %v1759
    %v1846 = vsel %vm336, %v1337, %v1761
    %v1847 = vsel %vm336, %v1340, %v1763
    %v1848 = vsel %vm336, %v1366, %v1765
    %v1849 = vsel %vm336, %v1369, %v1767
    %v1850 = vsel %vm336, %v1395, %v1769
    %v1851 = vsel %vm336, %v1398, %v1771
    %vm1852 = vcmask 261120
    %v1853 = vsel %vm1852, %v1844, %v1789
    %v1854 = vsel %vm1852, %v1845, %v1791
    %v1855 = vsel %vm1852, %v1846, %v1793
    %v1856 = vsel %vm1852, %v1847, %v1795
    %v1857 = vsel %vm1852, %v1848, %v1797
    %v1858 = vsel %vm1852, %v1849, %v1799
    %v1859 = vsel %vm1852, %v1850, %v1801
    %v1860 = vsel %vm1852, %v1851, %v1803
    %vm1861 = vcmask 392192
    %v1862 = vsel %vm1861, %v1853, %v1821
    %v1863 = vsel %vm1861, %v1854, %v1823
    %v1864 = vsel %vm1861, %v1855, %v1825
    %v1865 = vsel %vm1861, %v1856, %v1827
    %v1866 = vsel %vm1861, %v1857, %v1829
    %v1867 = vsel %vm1861, %v1858, %v1831
    %v1868 = vsel %vm1861, %v1859, %v1833
    %v1869 = vsel %vm1861, %v1860, %v1835
    %v1870 = vld [vmem:[#allocation7] sm:$0xff]
    %v1871 = vld [vmem:[#allocation7 + $0x8] sm:$0xff]
    %v1872 = vld [vmem:[#allocation7 + $0x10] sm:$0xff]
    %v1873 = vld [vmem:[#allocation7 + $0x18] sm:$0xff]
    %v1874 = vld [vmem:[#allocation7 + $0x20] sm:$0xff]
    %v1875 = vld [vmem:[#allocation7 + $0x28] sm:$0xff]
    %v1876 = vld [vmem:[#allocation7 + $0x30] sm:$0xff]
    %v1877 = vld [vmem:[#allocation7 + $0x38] sm:$0xff]
    %v1878 = vld [vmem:[%s3] sm:$0x1]
    %v1880 = vperm.slane %v1878, 0
    %v1883 = vsel %vm89, %v1862, 0
    %v1886 = vsel %vm89, %v1863, 0
    %v1889 = vsel %vm89, %v1864, 0
    %v1892 = vsel %vm89, %v1865, 0
    %v1895 = vsel %vm89, %v1866, 0
    %v1898 = vsel %vm89, %v1867, 0
    %v1901 = vsel %vm89, %v1868, 0
    %v1904 = vsel %vm89, %v1869, 0
    %1906 = vmatpush.msra.mxu0 0.0
    %1907 = vmatpush.msra.mxu0 0.0
    %1908 = vmatpush.msra.mxu0 0.0
    %1909 = vmatpush.msra.mxu0 0.0
    %1910 = vmatpush.msra.mxu0 0.0
    %1911 = vmatpush.msra.mxu0 0.0
    %1912 = vmatpush.msra.mxu0 0.0
    %1913 = vmatpush.msra.mxu0 0.0
    %1914 = vmatpush.msra.mxu0 %v1877
    %1915 = vmatpush.msra.mxu0 %v1876
    %1916 = vmatpush.msra.mxu0 %v1875
    %1917 = vmatpush.msra.mxu0 %v1874
    %1918 = vmatpush.msra.mxu0 %v1873
    %1919 = vmatpush.msra.mxu0 %v1872
    %1920 = vmatpush.msra.mxu0 %v1871
    %1921 = vmatpush.msra.mxu0 %v1870
    %1922 = vmatmul.f32.gmra.mxu0 %v1883
    %v1923 = vpop.f32.mrf.mxu0
    %v1924 = vadd.f32 %v1880, %v1923
    %1925 = vmatmul.f32.gmra.mxu0 %v1886
    %v1926 = vpop.f32.mrf.mxu0
    %v1927 = vadd.f32 %v1880, %v1926
    %1928 = vmatmul.f32.gmra.mxu0 %v1889
    %v1929 = vpop.f32.mrf.mxu0
    %v1930 = vadd.f32 %v1880, %v1929
    %1931 = vmatmul.f32.gmra.mxu0 %v1892
    %v1932 = vpop.f32.mrf.mxu0
    %v1933 = vadd.f32 %v1880, %v1932
    %1934 = vmatmul.f32.gmra.mxu0 %v1895
    %v1935 = vpop.f32.mrf.mxu0
    %v1936 = vadd.f32 %v1880, %v1935
    %1937 = vmatmul.f32.gmra.mxu0 %v1898
    %v1938 = vpop.f32.mrf.mxu0
    %v1939 = vadd.f32 %v1880, %v1938
    %1940 = vmatmul.f32.gmra.mxu0 %v1901
    %v1941 = vpop.f32.mrf.mxu0
    %v1942 = vadd.f32 %v1880, %v1941
    %1943 = vmatmul.f32.gmra.mxu0 %v1904
    %v1944 = vpop.f32.mrf.mxu0
    %v1945 = vadd.f32 %v1880, %v1944
    %1946 = vdwg.mxu0
    %1947 = vst [vmem:[#allocation8] sm:$0xff] %v1924
    %1948 = vst [vmem:[#allocation8 + $0x8] sm:$0xff] %v1927
    %1949 = vst [vmem:[#allocation8 + $0x10] sm:$0xff] %v1930
    %1950 = vst [vmem:[#allocation8 + $0x18] sm:$0xff] %v1933
    %1951 = vst [vmem:[#allocation8 + $0x20] sm:$0xff] %v1936
    %1952 = vst [vmem:[#allocation8 + $0x28] sm:$0xff] %v1939
    %1953 = vst [vmem:[#allocation8 + $0x30] sm:$0xff] %v1942
    %1954 = vst [vmem:[#allocation8 + $0x38] sm:$0xff] %v1945
    // Predicated region
    $region30: #{multi_head_attention.1} parent=1 // pred_check
      _
    $region31: #{multi_head_attention.1} parent=1 // pred_check_branch
      %1956 = sbr.rel (0) target = $region33
    $region32: #{multi_head_attention.1} parent=1 // pred_region
      %1958 = vsyncadd [#allocation4], 0
      %s1959 = sshll.u32 [#allocation8], 4
      %s1960 = int_to_ptr.vmem [resolvable:$true] %s1959
      %s1961 = sshll.u32 %s4, 4
      %s1962 = int_to_ptr.hbm [resolvable:$true] %s1961
      %1967 = dma.vmem_to_hbm [thread:$0]  %s1960, 1024, %s1962, [#allocation4], 128, 128, 8
    $region33: #{multi_head_attention.1} parent=1 // pred_fallthru
      _
    // Predicated region
    $region34: #{multi_head_attention.1} parent=1 // pred_check
      _
    $region35: #{multi_head_attention.1} parent=1 // pred_check_branch
      %1969 = sbr.rel (0) target = $region37
    $region36: #{multi_head_attention.1} parent=1 // pred_region
      %1971 = dma.done [#allocation4], 1024
    $region37: #{multi_head_attention.1} parent=1 // pred_fallthru
      _
    %1972 = vsyncpa [#allocation3], 1
    %1973 = vsyncpa [#allocation6], 1
    %1974 = vsyncpa [#allocation4], 1

</llo_original>
